<compile_context>
chip_gen: v7x
topology: tpu7x:2x2x1
jax: 0.10.0
libtpu: 0.0.40
codegen_flags: <defaults>
</compile_context>

<pallas_src>
import jax
import jax.numpy as jnp
from jax.experimental import pallas as pl
from jax.experimental.pallas import tpu as pltpu

OUT_H = 224
OUT_W = 224


def _resize_weights(in_size: int, out_size: int) -> jnp.ndarray:
    """PIL/torchvision antialias bilinear resampling weights, shape (out, in)."""
    scale = in_size / out_size
    support = max(scale, 1.0)          # triangle support widens when downscaling
    i = jnp.arange(out_size, dtype=jnp.float32)
    j = jnp.arange(in_size, dtype=jnp.float32)
    center = (i + 0.5) * scale
    x = (j[None, :] + 0.5 - center[:, None]) / support
    w = jnp.maximum(1.0 - jnp.abs(x), 0.0)
    return w / jnp.sum(w, axis=1, keepdims=True)


def _round_up(x: int, m: int) -> int:
    return ((x + m - 1) // m) * m


def _make_kernel(has_alpha: bool, contract_h: bool, single_step: bool,
                 quantize: bool):
    """Grid = (n_other blocks of the non-contracted axis, n_red reduction steps)."""

    def _finish(r):
        if quantize:
            # torchvision v2 Resize on uint8 rounds/clamps back to uint8, then
            # ToDtype(float32, scale=True) + Normalize(0.5, 0.5) == 2x/255 - 1.
            # (floor(x+0.5) vs round-half-even only differs at exact .5 ties.)
            r = jnp.clip(jnp.floor(r + 0.5), 0.0, 255.0) * (2.0 / 255.0) - 1.0
        return r

    def kernel(*refs):
        if single_step:
            img_ref, w_red_ref, w_other_ref, out_ref = refs
            acc_ref = None
        else:
            img_ref, w_red_ref, w_other_ref, out_ref, acc_ref = refs

        w = w_red_ref[...]                                   # bf16 stage-1 weight

        if has_alpha:
            a = img_ref[3].astype(jnp.float32)               # alpha in 0..255
            a_scl = a * (1.0 / 255.0)
            base = (255.0 - a) + 0.5                         # white bg + round bias

        def channel_bf16(c):
            # uint8 -> f32 happens in VMEM; composite result is an integer
            # 0..255, exactly representable in bf16.
            x = img_ref[c].astype(jnp.float32)
            if has_alpha:
                x = jnp.floor(x * a_scl + base)
            return x.astype(jnp.bfloat16)

        if single_step:
            wo = w_other_ref[...]                            # f32 stage-2 weight
            for c in range(3):
                xb = channel_bf16(c)
                if contract_h:
                    t = jnp.dot(w, xb, preferred_element_type=jnp.float32)
                    r = jnp.dot(t, wo, preferred_element_type=jnp.float32)
                else:
                    t = jnp.dot(xb, w, preferred_element_type=jnp.float32)
                    r = jnp.dot(wo, t, preferred_element_type=jnp.float32)
                out_ref[0, c] = _finish(r)
            return

        k = pl.program_id(1)

        @pl.when(k == 0)
        def _init():
            acc_ref[...] = jnp.zeros_like(acc_ref)

        for c in range(3):
            xb = channel_bf16(c)
            if contract_h:
                acc_ref[c] += jnp.dot(w, xb, preferred_element_type=jnp.float32)
            else:
                acc_ref[c] += jnp.dot(xb, w, preferred_element_type=jnp.float32)

        @pl.when(k == pl.num_programs(1) - 1)
        def _finalize():
            wo = w_other_ref[...]                            # f32 stage-2 weight
            for c in range(3):
                if contract_h:
                    r = jnp.dot(acc_ref[c], wo, preferred_element_type=jnp.float32)
                else:
                    r = jnp.dot(wo, acc_ref[c], preferred_element_type=jnp.float32)
                out_ref[0, c] = _finish(r)

    return kernel


def siglip2_preprocess(image_u8: jnp.ndarray) -> jnp.ndarray:
    """image_u8: uint8 (C, H, W), C in {3, 4}. Returns (1, 3, 224, 224) float32."""
    C, H, W = image_u8.shape
    if C not in (3, 4):
        raise ValueError(f"expected 3 or 4 channels, got {C}")
    # TODO(synk): PIL file decoding (Image.open) and exotic-mode .convert('RGB')
    # have no Pallas equivalent; the kernel starts from the decoded uint8 tensor.
    has_alpha = C == 4
    contract_h = H >= W                    # contract the longer spatial axis first
    red_dim, other_dim = (H, W) if contract_h else (W, H)

    # ---- reduction-axis tiling (pipelined whenever red_dim >= 512) -------------
    if red_dim < 512:
        n_red, tile_red = 1, red_dim
    else:
        # contract-H blocks are fully contiguous rows; contract-W blocks are
        # strided with `tile_red` contiguous bytes per row -> bigger target there.
        target = 256 if contract_h else 512
        n_red = max(2, pl.cdiv(red_dim, target))
        tile_red = _round_up(pl.cdiv(red_dim, n_red), 128)   # 128-granular, small pad
        n_red = pl.cdiv(red_dim, tile_red)
    red_pad = n_red * tile_red

    # ---- non-contracted-axis tiling (v7x megacore split + working-set bound) ---
    if other_dim < 1024:
        n_other, tile_other = 1, other_dim
    else:
        n_other = pl.cdiv(other_dim, 512)
        tile_other = _round_up(pl.cdiv(other_dim, n_other), 128)
        n_other = pl.cdiv(other_dim, tile_other)
    other_pad = n_other * tile_other

    single_step = n_red == 1
    quantize_in_kernel = n_other == 1      # else: sum partials + quantise in XLA

    wh = _resize_weights(H, OUT_H)         # (224, H)
    ww = _resize_weights(W, OUT_W)         # (224, W)

    if contract_h:
        w_red = wh                                           # contract over H
        if red_pad != H:
            w_red = jnp.pad(w_red, ((0, 0), (0, red_pad - H)))
        w_other = ww.T                                       # (W, 224)
        if other_pad != W:
            w_other = jnp.pad(w_other, ((0, other_pad - W), (0, 0)))
        w_red_spec = pl.BlockSpec((OUT_H, tile_red), lambda j, k: (0, k))
        w_other_spec = pl.BlockSpec((tile_other, OUT_W), lambda j, k: (j, 0))
        img_block = (C, tile_red, tile_other)
        img_idx = lambda j, k: (0, k, j)
        acc_shape = (3, OUT_H, tile_other)
    else:
        w_red = ww.T                                         # contract over W
        if red_pad != W:
            w_red = jnp.pad(w_red, ((0, red_pad - W), (0, 0)))
        w_other = wh                                         # (224, H)
        if other_pad != H:
            w_other = jnp.pad(w_other, ((0, 0), (0, other_pad - H)))
        w_red_spec = pl.BlockSpec((tile_red, OUT_W), lambda j, k: (k, 0))
        w_other_spec = pl.BlockSpec((OUT_H, tile_other), lambda j, k: (0, j))
        img_block = (C, tile_other, tile_red)
        img_idx = lambda j, k: (0, j, k)
        acc_shape = (3, tile_other, OUT_W)

    # bf16 stage-1 weights (MXU native rate); stage-2 weight stays f32.
    w_red = w_red.astype(jnp.bfloat16)

    # ---- explicit VMEM budget (no 32 MiB floor, <= 56 MiB cap for v7x headroom) -
    img_blk = C * tile_red * tile_other                      # uint8 bytes
    est = (2 * img_blk                                       # image blocks, 2 bufs
           + 2 * 2 * OUT_H * tile_red                        # bf16 stage-1 weight
           + 2 * 4 * OUT_H * tile_other                      # f32 stage-2 weight
           + 2 * 4 * 3 * OUT_H * OUT_W                       # output block, 2 bufs
           + (0 if single_step else 4 * 3 * OUT_H * tile_other)   # accumulator
           + 6 * tile_red * tile_other                       # per-channel f32+bf16
           + (12 * tile_red * tile_other if has_alpha else 0)     # a, a_scl, base
           + 4 * OUT_H * tile_other                          # matmul temporary
           + 4 * OUT_H * OUT_W)                              # finalize temporary
    vmem_limit = max(8 << 20, min(int(est * 1.5) + (2 << 20), 56 << 20))

    scratch = [] if single_step else [pltpu.VMEM(acc_shape, jnp.float32)]

    out = pl.pallas_call(
        _make_kernel(has_alpha, contract_h, single_step, quantize_in_kernel),
        out_shape=jax.ShapeDtypeStruct((n_other, 3, OUT_H, OUT_W), jnp.float32),
        grid_spec=pltpu.PrefetchScalarGridSpec(
            num_scalar_prefetch=0,
            grid=(n_other, n_red),
            in_specs=[pl.BlockSpec(img_block, img_idx), w_red_spec, w_other_spec],
            out_specs=pl.BlockSpec((1, 3, OUT_H, OUT_W), lambda j, k: (j, 0, 0, 0)),
            scratch_shapes=scratch,
        ),
        compiler_params=pltpu.CompilerParams(
            dimension_semantics=("parallel", "arbitrary"),
            vmem_limit_bytes=vmem_limit,
        ),
    )(image_u8, w_red, w_other)

    if quantize_in_kernel:
        return out                         # already (1, 3, 224, 224), normalised
    # Sum the raw partial resized slabs from each other-block, then apply the
    # uint8 re-quantisation + normalisation once (tiny 600 KB XLA epilogue).
    s = jnp.sum(out, axis=0)
    s = jnp.clip(jnp.floor(s + 0.5), 0.0, 255.0)
    return (s * (2.0 / 255.0) - 1.0)[None, ...]


def _reference(image_u8: jnp.ndarray) -> jnp.ndarray:
    """Pure-JAX f32 reference (same composite / rounding semantics as the kernel)."""
    C, H, W = image_u8.shape
    img = image_u8.astype(jnp.float32)
    if C == 4:
        a = img[3:4]
        comp = jnp.floor(img[:3] * (a * (1.0 / 255.0)) + ((255.0 - a) + 0.5))
    else:
        comp = img
    wh = _resize_weights(H, OUT_H)
    ww = _resize_weights(W, OUT_W)
    resized = jnp.einsum("oh,chw,pw->cop", wh, comp, ww,
                         precision=jax.lax.Precision.HIGHEST)
    q = jnp.clip(jnp.floor(resized + 0.5), 0.0, 255.0)
    return (q * (2.0 / 255.0) - 1.0)[None, ...]


if __name__ == "__main__":
    key = jax.random.PRNGKey(0)
    ks = jax.random.split(key, 5)

    def rnd(k, shape):
        return jax.random.randint(k, shape, 0, 256,
                                  dtype=jnp.int32).astype(jnp.uint8)

    cases = {
        # RGBA, square, single reduction step, in-kernel quantisation
        "rgba_16x16": rnd(ks[0], (4, 16, 16)),
        # RGB, wide (contract-W path), tiny
        "rgb_16x24": rnd(ks[1], (3, 16, 24)),
        # RGBA, tall: tiled reduction (5 steps), n_other == 1
        "rgba_1280x160": rnd(ks[2], (4, 1280, 160)),
        # RGB, wide: contract-W with padded reduction edge (1400 -> 1536)
        "rgb_640x1400": rnd(ks[3], (3, 640, 1400)),
        # RGBA, large: other axis split into 3 parallel blocks, wrapper epilogue,
        # padded other edge (1100 -> 1152)
        "rgba_1280x1100": rnd(ks[4], (4, 1280, 1100)),
    }

    # Kernel and reference share exact composite / rounding semantics; the only
    # divergence is the bf16 stage-1 weights (|err| <= 255 * 2^-9 < 0.5 before
    # re-quantisation), i.e. at most one uint8 LSB (= 2/255) after rounding.
    tol = (2.0 / 255.0) + 1e-3

    for name, img in cases.items():
        out = jax.block_until_ready(siglip2_preprocess(img))
        assert out.shape == (1, 3, OUT_H, OUT_W), (name, out.shape)
        assert out.dtype == jnp.float32, (name, out.dtype)
        ref = jax.block_until_ready(_reference(img))
        err = float(jnp.max(jnp.abs(out - ref)))
        if err > tol:
            raise AssertionError(
                f"{name}: max |kernel - reference| = {err:.5f} > {tol:.5f}")

    print("KERNEL_OK")
</pallas_src>

<mosaic_0001>
module attributes {stable_mosaic.version = 11 : i64} {
  func.func @kernel(%arg0: i32, %arg1: i32, %arg2: memref<4x16x16xi8, #tpu.memory_space<vmem>>, %arg3: memref<224x16xbf16, #tpu.memory_space<vmem>>, %arg4: memref<16x224xf32, #tpu.memory_space<vmem>>, %arg5: memref<1x3x224x224xf32, #tpu.memory_space<vmem>>) attributes {dimension_semantics = [#tpu.dimension_semantics<parallel>, #tpu.dimension_semantics<arbitrary>], iteration_bounds = array<i64: 1, 1>, scalar_prefetch = 0 : i64, scratch_operands = 0 : i64, tpu.core_type = #tpu.core_type<tc>, window_params = [{transform_indices = @transform_0, window_bounds = array<i64: 4, 16, 16>}, {transform_indices = @transform_1, window_bounds = array<i64: 224, 16>}, {transform_indices = @transform_2, window_bounds = array<i64: 16, 224>}, {transform_indices = @transform_3, window_bounds = array<i64: 1, 3, 224, 224>}]} {
    %c0 = arith.constant 0 : index
    %c0_0 = arith.constant 0 : index
    %0 = vector.load %arg3[%c0, %c0_0] : memref<224x16xbf16, #tpu.memory_space<vmem>>, vector<224x16xbf16>
    %c3 = arith.constant 3 : index
    %c0_1 = arith.constant 0 : index
    %c0_2 = arith.constant 0 : index
    %1 = vector.load %arg2[%c3, %c0_1, %c0_2] : memref<4x16x16xi8, #tpu.memory_space<vmem>>, vector<1x16x16xi8>
    %2 = vector.shape_cast %1 : vector<1x16x16xi8> to vector<16x16xi8>
    %3 = arith.uitofp %2 : vector<16x16xi8> to vector<16x16xf32>
    %cst = arith.constant 0.00392156886 : f32
    %4 = vector.broadcast %cst : f32 to vector<16x16xf32>
    %5 = arith.mulf %3, %4 : vector<16x16xf32>
    %cst_3 = arith.constant 2.550000e+02 : f32
    %6 = vector.broadcast %cst_3 : f32 to vector<16x16xf32>
    %7 = arith.subf %6, %3 : vector<16x16xf32>
    %cst_4 = arith.constant 5.000000e-01 : f32
    %8 = vector.broadcast %cst_4 : f32 to vector<16x16xf32>
    %9 = arith.addf %7, %8 : vector<16x16xf32>
    %c0_5 = arith.constant 0 : index
    %c0_6 = arith.constant 0 : index
    %10 = vector.load %arg4[%c0_5, %c0_6] : memref<16x224xf32, #tpu.memory_space<vmem>>, vector<16x224xf32>
    %c0_7 = arith.constant 0 : index
    %c0_8 = arith.constant 0 : index
    %c0_9 = arith.constant 0 : index
    %11 = vector.load %arg2[%c0_7, %c0_8, %c0_9] : memref<4x16x16xi8, #tpu.memory_space<vmem>>, vector<1x16x16xi8>
    %12 = vector.shape_cast %11 : vector<1x16x16xi8> to vector<16x16xi8>
    %13 = arith.uitofp %12 : vector<16x16xi8> to vector<16x16xf32>
    %14 = arith.mulf %13, %5 : vector<16x16xf32>
    %15 = arith.addf %14, %9 : vector<16x16xf32>
    %16 = math.floor %15 : vector<16x16xf32>
    %17 = arith.truncf %16 : vector<16x16xf32> to vector<16x16xbf16>
    %cst_10 = arith.constant dense<0.000000e+00> : vector<224x16xf32>
    %18 = tpu.matmul %0, %17, %cst_10 {dimension_numbers = #tpu.dot_dimension_numbers<[1], [0], [0], [1], [0, 0, 1, 1], [], []>} : vector<224x16xbf16>, vector<16x16xbf16>, vector<224x16xf32> -> vector<224x16xf32>
    %cst_11 = arith.constant dense<0.000000e+00> : vector<224x224xf32>
    %19 = tpu.matmul %18, %10, %cst_11 {dimension_numbers = #tpu.dot_dimension_numbers<[1], [0], [0], [1], [0, 0, 1, 1], [], []>} : vector<224x16xf32>, vector<16x224xf32>, vector<224x224xf32> -> vector<224x224xf32>
    %cst_12 = arith.constant 5.000000e-01 : f32
    %20 = vector.broadcast %cst_12 : f32 to vector<224x224xf32>
    %21 = arith.addf %19, %20 : vector<224x224xf32>
    %22 = math.floor %21 : vector<224x224xf32>
    %cst_13 = arith.constant 0.000000e+00 : f32
    %cst_14 = arith.constant 2.550000e+02 : f32
    %23 = vector.broadcast %cst_13 : f32 to vector<224x224xf32>
    %24 = arith.maximumf %23, %22 : vector<224x224xf32>
    %25 = vector.broadcast %cst_14 : f32 to vector<224x224xf32>
    %26 = arith.minimumf %25, %24 : vector<224x224xf32>
    %cst_15 = arith.constant 0.00784313772 : f32
    %27 = vector.broadcast %cst_15 : f32 to vector<224x224xf32>
    %28 = arith.mulf %26, %27 : vector<224x224xf32>
    %cst_16 = arith.constant 1.000000e+00 : f32
    %29 = vector.broadcast %cst_16 : f32 to vector<224x224xf32>
    %30 = arith.subf %28, %29 : vector<224x224xf32>
    %c0_17 = arith.constant 0 : index
    %c0_18 = arith.constant 0 : index
    %c0_19 = arith.constant 0 : index
    %c0_20 = arith.constant 0 : index
    %31 = vector.load %arg5[%c0_17, %c0_18, %c0_19, %c0_20] : memref<1x3x224x224xf32, #tpu.memory_space<vmem>>, vector<1x1x224x224xf32>
    %32 = vector.shape_cast %31 : vector<1x1x224x224xf32> to vector<224x224xf32>
    %33 = vector.shape_cast %30 : vector<224x224xf32> to vector<1x1x224x224xf32>
    tpu.vector_store %arg5[%c0_17, %c0_18, %c0_19, %c0_20], %33 {strides = array<i32>} : memref<1x3x224x224xf32, #tpu.memory_space<vmem>>, vector<1x1x224x224xf32>,
    %c1 = arith.constant 1 : index
    %c0_21 = arith.constant 0 : index
    %c0_22 = arith.constant 0 : index
    %34 = vector.load %arg2[%c1, %c0_21, %c0_22] : memref<4x16x16xi8, #tpu.memory_space<vmem>>, vector<1x16x16xi8>
    %35 = vector.shape_cast %34 : vector<1x16x16xi8> to vector<16x16xi8>
    %36 = arith.uitofp %35 : vector<16x16xi8> to vector<16x16xf32>
    %37 = arith.mulf %36, %5 : vector<16x16xf32>
    %38 = arith.addf %37, %9 : vector<16x16xf32>
    %39 = math.floor %38 : vector<16x16xf32>
    %40 = arith.truncf %39 : vector<16x16xf32> to vector<16x16xbf16>
    %cst_23 = arith.constant dense<0.000000e+00> : vector<224x16xf32>
    %41 = tpu.matmul %0, %40, %cst_23 {dimension_numbers = #tpu.dot_dimension_numbers<[1], [0], [0], [1], [0, 0, 1, 1], [], []>} : vector<224x16xbf16>, vector<16x16xbf16>, vector<224x16xf32> -> vector<224x16xf32>
    %cst_24 = arith.constant dense<0.000000e+00> : vector<224x224xf32>
    %42 = tpu.matmul %41, %10, %cst_24 {dimension_numbers = #tpu.dot_dimension_numbers<[1], [0], [0], [1], [0, 0, 1, 1], [], []>} : vector<224x16xf32>, vector<16x224xf32>, vector<224x224xf32> -> vector<224x224xf32>
    %cst_25 = arith.constant 5.000000e-01 : f32
    %43 = vector.broadcast %cst_25 : f32 to vector<224x224xf32>
    %44 = arith.addf %42, %43 : vector<224x224xf32>
    %45 = math.floor %44 : vector<224x224xf32>
    %cst_26 = arith.constant 0.000000e+00 : f32
    %cst_27 = arith.constant 2.550000e+02 : f32
    %46 = vector.broadcast %cst_26 : f32 to vector<224x224xf32>
    %47 = arith.maximumf %46, %45 : vector<224x224xf32>
    %48 = vector.broadcast %cst_27 : f32 to vector<224x224xf32>
    %49 = arith.minimumf %48, %47 : vector<224x224xf32>
    %cst_28 = arith.constant 0.00784313772 : f32
    %50 = vector.broadcast %cst_28 : f32 to vector<224x224xf32>
    %51 = arith.mulf %49, %50 : vector<224x224xf32>
    %cst_29 = arith.constant 1.000000e+00 : f32
    %52 = vector.broadcast %cst_29 : f32 to vector<224x224xf32>
    %53 = arith.subf %51, %52 : vector<224x224xf32>
    %c0_30 = arith.constant 0 : index
    %c1_31 = arith.constant 1 : index
    %c0_32 = arith.constant 0 : index
    %c0_33 = arith.constant 0 : index
    %54 = vector.load %arg5[%c0_30, %c1_31, %c0_32, %c0_33] : memref<1x3x224x224xf32, #tpu.memory_space<vmem>>, vector<1x1x224x224xf32>
    %55 = vector.shape_cast %54 : vector<1x1x224x224xf32> to vector<224x224xf32>
    %56 = vector.shape_cast %53 : vector<224x224xf32> to vector<1x1x224x224xf32>
    tpu.vector_store %arg5[%c0_30, %c1_31, %c0_32, %c0_33], %56 {strides = array<i32>} : memref<1x3x224x224xf32, #tpu.memory_space<vmem>>, vector<1x1x224x224xf32>,
    %c2 = arith.constant 2 : index
    %c0_34 = arith.constant 0 : index
    %c0_35 = arith.constant 0 : index
    %57 = vector.load %arg2[%c2, %c0_34, %c0_35] : memref<4x16x16xi8, #tpu.memory_space<vmem>>, vector<1x16x16xi8>
    %58 = vector.shape_cast %57 : vector<1x16x16xi8> to vector<16x16xi8>
    %59 = arith.uitofp %58 : vector<16x16xi8> to vector<16x16xf32>
    %60 = arith.mulf %59, %5 : vector<16x16xf32>
    %61 = arith.addf %60, %9 : vector<16x16xf32>
    %62 = math.floor %61 : vector<16x16xf32>
    %63 = arith.truncf %62 : vector<16x16xf32> to vector<16x16xbf16>
    %cst_36 = arith.constant dense<0.000000e+00> : vector<224x16xf32>
    %64 = tpu.matmul %0, %63, %cst_36 {dimension_numbers = #tpu.dot_dimension_numbers<[1], [0], [0], [1], [0, 0, 1, 1], [], []>} : vector<224x16xbf16>, vector<16x16xbf16>, vector<224x16xf32> -> vector<224x16xf32>
    %cst_37 = arith.constant dense<0.000000e+00> : vector<224x224xf32>
    %65 = tpu.matmul %64, %10, %cst_37 {dimension_numbers = #tpu.dot_dimension_numbers<[1], [0], [0], [1], [0, 0, 1, 1], [], []>} : vector<224x16xf32>, vector<16x224xf32>, vector<224x224xf32> -> vector<224x224xf32>
    %cst_38 = arith.constant 5.000000e-01 : f32
    %66 = vector.broadcast %cst_38 : f32 to vector<224x224xf32>
    %67 = arith.addf %65, %66 : vector<224x224xf32>
    %68 = math.floor %67 : vector<224x224xf32>
    %cst_39 = arith.constant 0.000000e+00 : f32
    %cst_40 = arith.constant 2.550000e+02 : f32
    %69 = vector.broadcast %cst_39 : f32 to vector<224x224xf32>
    %70 = arith.maximumf %69, %68 : vector<224x224xf32>
    %71 = vector.broadcast %cst_40 : f32 to vector<224x224xf32>
    %72 = arith.minimumf %71, %70 : vector<224x224xf32>
    %cst_41 = arith.constant 0.00784313772 : f32
    %73 = vector.broadcast %cst_41 : f32 to vector<224x224xf32>
    %74 = arith.mulf %72, %73 : vector<224x224xf32>
    %cst_42 = arith.constant 1.000000e+00 : f32
    %75 = vector.broadcast %cst_42 : f32 to vector<224x224xf32>
    %76 = arith.subf %74, %75 : vector<224x224xf32>
    %c0_43 = arith.constant 0 : index
    %c2_44 = arith.constant 2 : index
    %c0_45 = arith.constant 0 : index
    %c0_46 = arith.constant 0 : index
    %77 = vector.load %arg5[%c0_43, %c2_44, %c0_45, %c0_46] : memref<1x3x224x224xf32, #tpu.memory_space<vmem>>, vector<1x1x224x224xf32>
    %78 = vector.shape_cast %77 : vector<1x1x224x224xf32> to vector<224x224xf32>
    %79 = vector.shape_cast %76 : vector<224x224xf32> to vector<1x1x224x224xf32>
    tpu.vector_store %arg5[%c0_43, %c2_44, %c0_45, %c0_46], %79 {strides = array<i32>} : memref<1x3x224x224xf32, #tpu.memory_space<vmem>>, vector<1x1x224x224xf32>,
    return
  }
  func.func @transform_0(%arg0: i32, %arg1: i32) -> (i32, i32, i32) {
    %c0_i32 = arith.constant 0 : i32
    %c0_i32_0 = arith.constant 0 : i32
    return %c0_i32, %arg1, %arg0 : i32, i32, i32
  }
  func.func @transform_1(%arg0: i32, %arg1: i32) -> (i32, i32) {
    %c0_i32 = arith.constant 0 : i32
    %c0_i32_0 = arith.constant 0 : i32
    return %c0_i32, %arg1 : i32, i32
  }
  func.func @transform_2(%arg0: i32, %arg1: i32) -> (i32, i32) {
    %c0_i32 = arith.constant 0 : i32
    %c0_i32_0 = arith.constant 0 : i32
    return %arg0, %c0_i32 : i32, i32
  }
  func.func @transform_3(%arg0: i32, %arg1: i32) -> (i32, i32, i32, i32) {
    %c0_i32 = arith.constant 0 : i32
    %c0_i32_0 = arith.constant 0 : i32
    %c0_i32_1 = arith.constant 0 : i32
    %c0_i32_2 = arith.constant 0 : i32
    return %arg0, %c0_i32, %c0_i32_0, %c0_i32_1 : i32, i32, i32, i32
  }
}

</mosaic_0001>

<llo_original>
// kernel: tpu_custom_call.1
$region0: #{tpu_custom_call.1}
  #allocation0 [shape = 'u32[]', space=smem, size = 0x4, offset = 0x4, fixed_abs, tag = 'smem constant byte address 0x4 - core index']
  #allocation1 [shape = 'u32[144,128]{1,0:T(1,128)}', space=vmem, size = 0x12000, scoped, tag = 'internal scratch']
  %s0 = inlined_call_operand.vmem [shape: u8[4,16,16], index: 0, kind: input, shape index: {}]
  %s1 = inlined_call_operand.vmem [shape: bf16[224,16], index: 1, kind: input, shape index: {}]
  %s2 = inlined_call_operand.vmem [shape: f32[16,224], index: 2, kind: input, shape index: {}]
  %s3 = inlined_call_operand.hbm [shape: f32[1,3,224,224], index: 3, kind: output, shape index: {}]
  %s4 = sld [smem:[#allocation0]]
  $region22: #{tpu_custom_call.1} parent=0
    _
  %s6 = ssub.s32 1, %s4
  %s7 = scalar_select 0, %s6, %s4
  $region1: #{tpu_custom_call.1} parent=0
    #allocation2 [shape = 'u8[688128]{0}', space=vmem, size = 0xa8000, scoped, tag = 'output window, operand 0, single buffered']
    #allocation3 [shape = 's32[1]{0}', space=sflag, size = 0x4, scoped, tag = 'scoped memory for tpu_custom_call.1']
    %8 = vsyncpa [#allocation3], 0
    // Predicated region
    $region2: #{tpu_custom_call.1} parent=1 // pred_check
      _
    $region3: #{tpu_custom_call.1} parent=1 // pred_check_branch
      %10 = sbr.rel (0) target = $region5
    $region4: #{tpu_custom_call.1} parent=1 // pred_region
      _
    $region5: #{tpu_custom_call.1} parent=1 // pred_fallthru
      _
    // Predicated region
    $region6: #{tpu_custom_call.1} parent=1 // pred_check
      _
    $region7: #{tpu_custom_call.1} parent=1 // pred_check_branch
      %12 = sbr.rel (0) target = $region9
    $region8: #{tpu_custom_call.1} parent=1 // pred_region
      _
    $region9: #{tpu_custom_call.1} parent=1 // pred_fallthru
      _
    // Predicated region
    $region10: #{tpu_custom_call.1} parent=1 // pred_check
      _
    $region11: #{tpu_custom_call.1} parent=1 // pred_check_branch
      %14 = sbr.rel (0) target = $region13
    $region12: #{tpu_custom_call.1} parent=1 // pred_region
      _
    $region13: #{tpu_custom_call.1} parent=1 // pred_fallthru
      _
    %v16 = vld [vmem:[%s1] sm:$0xf]
    %v17 = vld [vmem:[%s1 + $0x4] sm:$0xf]
    %v18 = vld [vmem:[%s1 + $0x8] sm:$0xf]
    %v19 = vld [vmem:[%s1 + $0xc] sm:$0xf]
    %v20 = vld [vmem:[%s1 + $0x10] sm:$0xf]
    %v21 = vld [vmem:[%s1 + $0x14] sm:$0xf]
    %v22 = vld [vmem:[%s1 + $0x18] sm:$0xf]
    %v23 = vld [vmem:[%s1 + $0x1c] sm:$0xf]
    %v24 = vld [vmem:[%s1 + $0x20] sm:$0xf]
    %v25 = vld [vmem:[%s1 + $0x24] sm:$0xf]
    %v26 = vld [vmem:[%s1 + $0x28] sm:$0xf]
    %v27 = vld [vmem:[%s1 + $0x2c] sm:$0xf]
    %v28 = vld [vmem:[%s1 + $0x30] sm:$0xf]
    %v29 = vld [vmem:[%s1 + $0x34] sm:$0xf]
    %v30 = vld [vmem:[%s1 + $0x38] sm:$0xf]
    %v31 = vld [vmem:[%s1 + $0x3c] sm:$0xf]
    %v32 = vld [vmem:[%s1 + $0x40] sm:$0xf]
    %v33 = vld [vmem:[%s1 + $0x44] sm:$0xf]
    %v34 = vld [vmem:[%s1 + $0x48] sm:$0xf]
    %v35 = vld [vmem:[%s1 + $0x4c] sm:$0xf]
    %v36 = vld [vmem:[%s1 + $0x50] sm:$0xf]
    %v37 = vld [vmem:[%s1 + $0x54] sm:$0xf]
    %v38 = vld [vmem:[%s1 + $0x58] sm:$0xf]
    %v39 = vld [vmem:[%s1 + $0x5c] sm:$0xf]
    %v40 = vld [vmem:[%s1 + $0x60] sm:$0xf]
    %v41 = vld [vmem:[%s1 + $0x64] sm:$0xf]
    %v42 = vld [vmem:[%s1 + $0x68] sm:$0xf]
    %v43 = vld [vmem:[%s1 + $0x6c] sm:$0xf]
    %s44 = scalar_lea.vmem %s0, 12
    %v45 = vld [vmem:[%s44] sm:$0x3]
    %v46 = vld [vmem:[%s44 + $0x2] sm:$0x3]
    %v47 = vunpack.c.0.s8 %v45
    %v48 = vunpack.c.0.s8 %v46
    %v49 = vand.u32 %v47, 255
    %v50 = vand.u32 %v48, 255
    %v51 = vcvt.s32.f32 %v49
    %v52 = vcvt.s32.f32 %v50
    %v53 = vmul.f32 %v51, 0.003921569
    %v54 = vmul.f32 %v52, 0.003921569
    %v55 = vsub.f32 255.0, %v51
    %v56 = vsub.f32 255.0, %v52
    %v57 = vadd.f32 %v55, 0.5
    %v58 = vadd.f32 %v56, 0.5
    %v59 = vld [vmem:[%s2] sm:$0xff]
    %v60 = vld [vmem:[%s2 + $0x8] sm:$0xff]
    %v61 = vld [vmem:[%s2 + $0x10] sm:$0xff]
    %v62 = vld [vmem:[%s2 + $0x18] sm:$0xff]
    %v63 = vld [vmem:[%s0] sm:$0x3]
    %v64 = vld [vmem:[%s0 + $0x2] sm:$0x3]
    %v65 = vunpack.c.0.s8 %v63
    %v66 = vunpack.c.0.s8 %v64
    %v67 = vand.u32 %v65, 255
    %v68 = vand.u32 %v66, 255
    %v69 = vcvt.s32.f32 %v67
    %v70 = vcvt.s32.f32 %v68
    %v71 = vmul.f32 %v69, %v53
    %v72 = vmul.f32 %v70, %v54
    %v73 = vadd.f32 %v71, %v57
    %v74 = vadd.f32 %v72, %v58
    %v75 = vfloor.f32 %v73
    %v76 = vfloor.f32 %v74
    %v77 = vpack.c.bf16 %v76, %v75
    %v106 = vunpack.c.l.b16 %v16
    %v107 = vunpack.c.l.b16 %v17
    %v108 = vunpack.c.l.b16 %v18
    %v109 = vunpack.c.l.b16 %v19
    %v110 = vunpack.c.l.b16 %v20
    %v111 = vunpack.c.l.b16 %v21
    %v112 = vunpack.c.l.b16 %v22
    %v113 = vunpack.c.l.b16 %v23
    %v114 = vunpack.c.l.b16 %v24
    %v115 = vunpack.c.l.b16 %v25
    %v116 = vunpack.c.l.b16 %v26
    %v117 = vunpack.c.l.b16 %v27
    %v118 = vunpack.c.l.b16 %v28
    %v119 = vunpack.c.l.b16 %v29
    %v120 = vunpack.c.l.b16 %v30
    %v121 = vunpack.c.l.b16 %v31
    %v122 = vunpack.c.l.b16 %v32
    %v123 = vunpack.c.l.b16 %v33
    %v124 = vunpack.c.l.b16 %v34
    %v125 = vunpack.c.l.b16 %v35
    %v126 = vunpack.c.l.b16 %v36
    %v127 = vunpack.c.l.b16 %v37
    %v128 = vunpack.c.l.b16 %v38
    %v129 = vunpack.c.l.b16 %v39
    %v130 = vunpack.c.l.b16 %v40
    %v131 = vunpack.c.l.b16 %v41
    %v132 = vunpack.c.l.b16 %v42
    %v133 = vunpack.c.l.b16 %v43
    %v134 = vpack.c.b16 %v107, %v106
    %v135 = vpack.c.b16 %v109, %v108
    %v136 = vpack.c.b16 %v111, %v110
    %v137 = vpack.c.b16 %v113, %v112
    %v138 = vpack.c.b16 %v115, %v114
    %v139 = vpack.c.b16 %v117, %v116
    %v140 = vpack.c.b16 %v119, %v118
    %v141 = vpack.c.b16 %v121, %v120
    %v142 = vpack.c.b16 %v123, %v122
    %v143 = vpack.c.b16 %v125, %v124
    %v144 = vpack.c.b16 %v127, %v126
    %v145 = vpack.c.b16 %v129, %v128
    %v146 = vpack.c.b16 %v131, %v130
    %v147 = vpack.c.b16 %v133, %v132
    %vm148 = vcmask 130048
    %v150 = vsel %vm148, %v134, 0
    %v153 = vsel %vm148, %v135, 0
    %v156 = vsel %vm148, %v136, 0
    %v159 = vsel %vm148, %v137, 0
    %v162 = vsel %vm148, %v138, 0
    %v165 = vsel %vm148, %v139, 0
    %v168 = vsel %vm148, %v140, 0
    %v171 = vsel %vm148, %v141, 0
    %v174 = vsel %vm148, %v142, 0
    %v177 = vsel %vm148, %v143, 0
    %v180 = vsel %vm148, %v144, 0
    %v183 = vsel %vm148, %v145, 0
    %v186 = vsel %vm148, %v146, 0
    %v189 = vsel %vm148, %v147, 0
    %191 = vmatprep.subr.bf16.mxu0 0
    %192 = vmatpush1.bf16.msra.mxu0 %v77
    %193 = vmatprep.subr.bf16.mxu0 0
    %194 = vmatpush1.bf16.msra.mxu0 0
    %195 = vmatprep.subr.bf16.mxu0 0
    %196 = vmatpush1.bf16.msra.mxu0 0
    %197 = vmatprep.subr.bf16.mxu0 0
    %198 = vmatpush1.bf16.msra.mxu0 0
    %199 = vmatprep.subr.bf16.mxu0 0
    %200 = vmatpush1.bf16.msra.mxu0 0
    %201 = vmatprep.subr.bf16.mxu0 0
    %202 = vmatpush1.bf16.msra.mxu0 0
    %203 = vmatprep.subr.bf16.mxu0 0
    %204 = vmatpush1.bf16.msra.mxu0 0
    %205 = vmatprep.subr.bf16.mxu0 0
    %206 = vmatpush1.bf16.msra.mxu0 0
    %207 = vmatprep.subr.bf16.mxu0 0
    %208 = vmatpush1.bf16.msra.mxu0 0
    %209 = vmatprep.subr.bf16.mxu0 0
    %210 = vmatpush1.bf16.msra.mxu0 0
    %211 = vmatprep.subr.bf16.mxu0 0
    %212 = vmatpush1.bf16.msra.mxu0 0
    %213 = vmatprep.subr.bf16.mxu0 0
    %214 = vmatpush1.bf16.msra.mxu0 0
    %215 = vmatprep.subr.bf16.mxu0 0
    %216 = vmatpush1.bf16.msra.mxu0 0
    %217 = vmatprep.subr.bf16.mxu0 0
    %218 = vmatpush1.bf16.msra.mxu0 0
    %219 = vmatprep.subr.bf16.mxu0 0
    %220 = vmatpush1.bf16.msra.mxu0 0
    %221 = vmatprep.subr.bf16.mxu0 0
    %222 = vmatpush1.bf16.msra.mxu0 0
    %223 = vmatprep.mubr.bf16.mxu0 0
    %224 = vmatmul.mubr.bf16.gmra.mrb[0].mxu0 %v150
    %v225 = vpop.f32.mrb[0].mxu0
    %v226 = vadd.f32 0.0, %v225
    %v227 = vpop.f32.mrb[0].mxu0
    %v228 = vpop.f32.mrb[0].mxu0
    %v229 = vadd.f32 0.0, %v228
    %v230 = vpop.f32.mrb[0].mxu0
    %231 = vmatprep.mubr.bf16.mxu0 0
    %232 = vmatmul.mubr.bf16.gmra.mrb[0].mxu0 %v153
    %v233 = vpop.f32.mrb[0].mxu0
    %v234 = vadd.f32 0.0, %v233
    %v235 = vpop.f32.mrb[0].mxu0
    %v236 = vpop.f32.mrb[0].mxu0
    %v237 = vadd.f32 0.0, %v236
    %v238 = vpop.f32.mrb[0].mxu0
    %239 = vmatprep.mubr.bf16.mxu0 0
    %240 = vmatmul.mubr.bf16.gmra.mrb[0].mxu0 %v156
    %v241 = vpop.f32.mrb[0].mxu0
    %v242 = vadd.f32 0.0, %v241
    %v243 = vpop.f32.mrb[0].mxu0
    %v244 = vpop.f32.mrb[0].mxu0
    %v245 = vadd.f32 0.0, %v244
    %v246 = vpop.f32.mrb[0].mxu0
    %247 = vmatprep.mubr.bf16.mxu0 0
    %248 = vmatmul.mubr.bf16.gmra.mrb[0].mxu0 %v159
    %v249 = vpop.f32.mrb[0].mxu0
    %v250 = vadd.f32 0.0, %v249
    %v251 = vpop.f32.mrb[0].mxu0
    %v252 = vpop.f32.mrb[0].mxu0
    %v253 = vadd.f32 0.0, %v252
    %v254 = vpop.f32.mrb[0].mxu0
    %255 = vmatprep.mubr.bf16.mxu0 0
    %256 = vmatmul.mubr.bf16.gmra.mrb[0].mxu0 %v162
    %v257 = vpop.f32.mrb[0].mxu0
    %v258 = vadd.f32 0.0, %v257
    %v259 = vpop.f32.mrb[0].mxu0
    %v260 = vpop.f32.mrb[0].mxu0
    %v261 = vadd.f32 0.0, %v260
    %v262 = vpop.f32.mrb[0].mxu0
    %263 = vmatprep.mubr.bf16.mxu0 0
    %264 = vmatmul.mubr.bf16.gmra.mrb[0].mxu0 %v165
    %v265 = vpop.f32.mrb[0].mxu0
    %v266 = vadd.f32 0.0, %v265
    %v267 = vpop.f32.mrb[0].mxu0
    %v268 = vpop.f32.mrb[0].mxu0
    %v269 = vadd.f32 0.0, %v268
    %v270 = vpop.f32.mrb[0].mxu0
    %271 = vmatprep.mubr.bf16.mxu0 0
    %272 = vmatmul.mubr.bf16.gmra.mrb[0].mxu0 %v168
    %v273 = vpop.f32.mrb[0].mxu0
    %v274 = vadd.f32 0.0, %v273
    %v275 = vpop.f32.mrb[0].mxu0
    %v276 = vpop.f32.mrb[0].mxu0
    %v277 = vadd.f32 0.0, %v276
    %v278 = vpop.f32.mrb[0].mxu0
    %279 = vmatprep.mubr.bf16.mxu0 0
    %280 = vmatmul.mubr.bf16.gmra.mrb[0].mxu0 %v171
    %v281 = vpop.f32.mrb[0].mxu0
    %v282 = vadd.f32 0.0, %v281
    %v283 = vpop.f32.mrb[0].mxu0
    %v284 = vpop.f32.mrb[0].mxu0
    %v285 = vadd.f32 0.0, %v284
    %v286 = vpop.f32.mrb[0].mxu0
    %287 = vmatprep.mubr.bf16.mxu0 0
    %288 = vmatmul.mubr.bf16.gmra.mrb[0].mxu0 %v174
    %v289 = vpop.f32.mrb[0].mxu0
    %v290 = vadd.f32 0.0, %v289
    %v291 = vpop.f32.mrb[0].mxu0
    %v292 = vpop.f32.mrb[0].mxu0
    %v293 = vadd.f32 0.0, %v292
    %v294 = vpop.f32.mrb[0].mxu0
    %295 = vmatprep.mubr.bf16.mxu0 0
    %296 = vmatmul.mubr.bf16.gmra.mrb[0].mxu0 %v177
    %v297 = vpop.f32.mrb[0].mxu0
    %v298 = vadd.f32 0.0, %v297
    %v299 = vpop.f32.mrb[0].mxu0
    %v300 = vpop.f32.mrb[0].mxu0
    %v301 = vadd.f32 0.0, %v300
    %v302 = vpop.f32.mrb[0].mxu0
    %303 = vmatprep.mubr.bf16.mxu0 0
    %304 = vmatmul.mubr.bf16.gmra.mrb[0].mxu0 %v180
    %v305 = vpop.f32.mrb[0].mxu0
    %v306 = vadd.f32 0.0, %v305
    %v307 = vpop.f32.mrb[0].mxu0
    %v308 = vpop.f32.mrb[0].mxu0
    %v309 = vadd.f32 0.0, %v308
    %v310 = vpop.f32.mrb[0].mxu0
    %311 = vmatprep.mubr.bf16.mxu0 0
    %312 = vmatmul.mubr.bf16.gmra.mrb[0].mxu0 %v183
    %v313 = vpop.f32.mrb[0].mxu0
    %v314 = vadd.f32 0.0, %v313
    %v315 = vpop.f32.mrb[0].mxu0
    %v316 = vpop.f32.mrb[0].mxu0
    %v317 = vadd.f32 0.0, %v316
    %v318 = vpop.f32.mrb[0].mxu0
    %319 = vmatprep.mubr.bf16.mxu0 0
    %320 = vmatmul.mubr.bf16.gmra.mrb[0].mxu0 %v186
    %v321 = vpop.f32.mrb[0].mxu0
    %v322 = vadd.f32 0.0, %v321
    %v323 = vpop.f32.mrb[0].mxu0
    %v324 = vpop.f32.mrb[0].mxu0
    %v325 = vadd.f32 0.0, %v324
    %v326 = vpop.f32.mrb[0].mxu0
    %327 = vmatprep.mubr.bf16.mxu0 0
    %328 = vmatmul.mubr.bf16.gmra.mrb[0].mxu0 %v189
    %v329 = vpop.f32.mrb[0].mxu0
    %v330 = vadd.f32 0.0, %v329
    %v331 = vpop.f32.mrb[0].mxu0
    %v332 = vpop.f32.mrb[0].mxu0
    %v333 = vadd.f32 0.0, %v332
    %v334 = vpop.f32.mrb[0].mxu0
    %335 = vdwg.mxu0
    %v337 = vsel %vm148, %v226, 0
    %v340 = vsel %vm148, %v229, 0
    %v343 = vsel %vm148, %v234, 0
    %v346 = vsel %vm148, %v237, 0
    %v349 = vsel %vm148, %v242, 0
    %v352 = vsel %vm148, %v245, 0
    %v355 = vsel %vm148, %v250, 0
    %v358 = vsel %vm148, %v253, 0
    %v361 = vsel %vm148, %v258, 0
    %v364 = vsel %vm148, %v261, 0
    %v367 = vsel %vm148, %v266, 0
    %v370 = vsel %vm148, %v269, 0
    %v373 = vsel %vm148, %v274, 0
    %v376 = vsel %vm148, %v277, 0
    %v379 = vsel %vm148, %v282, 0
    %v382 = vsel %vm148, %v285, 0
    %v385 = vsel %vm148, %v290, 0
    %v388 = vsel %vm148, %v293, 0
    %v391 = vsel %vm148, %v298, 0
    %v394 = vsel %vm148, %v301, 0
    %v397 = vsel %vm148, %v306, 0
    %v400 = vsel %vm148, %v309, 0
    %v403 = vsel %vm148, %v314, 0
    %v406 = vsel %vm148, %v317, 0
    %v409 = vsel %vm148, %v322, 0
    %v412 = vsel %vm148, %v325, 0
    %v415 = vsel %vm148, %v330, 0
    %v418 = vsel %vm148, %v333, 0
    %420 = vmatprep.subr.mxu0 %v60
    %421 = vmatpush1.msra.mxu0 %v59
    %422 = vmatprep.subr.mxu0 %v62
    %423 = vmatpush1.msra.mxu0 %v61
    %424 = vmatprep.subr.mxu0 0.0
    %425 = vmatpush1.msra.mxu0 0.0
    %426 = vmatprep.subr.mxu0 0.0
    %427 = vmatpush1.msra.mxu0 0.0
    %428 = vmatprep.subr.mxu0 0.0
    %429 = vmatpush1.msra.mxu0 0.0
    %430 = vmatprep.subr.mxu0 0.0
    %431 = vmatpush1.msra.mxu0 0.0
    %432 = vmatprep.subr.mxu0 0.0
    %433 = vmatpush1.msra.mxu0 0.0
    %434 = vmatprep.subr.mxu0 0.0
    %435 = vmatpush1.msra.mxu0 0.0
    %436 = vmatprep.subr.mxu0 0.0
    %437 = vmatpush1.msra.mxu0 0.0
    %438 = vmatprep.subr.mxu0 0.0
    %439 = vmatpush1.msra.mxu0 0.0
    %440 = vmatprep.subr.mxu0 0.0
    %441 = vmatpush1.msra.mxu0 0.0
    %442 = vmatprep.subr.mxu0 0.0
    %443 = vmatpush1.msra.mxu0 0.0
    %444 = vmatprep.subr.mxu0 0.0
    %445 = vmatpush1.msra.mxu0 0.0
    %446 = vmatprep.subr.mxu0 0.0
    %447 = vmatpush1.msra.mxu0 0.0
    %448 = vmatprep.subr.mxu0 0.0
    %449 = vmatpush1.msra.mxu0 0.0
    %450 = vmatprep.subr.mxu0 0.0
    %451 = vmatpush1.msra.mxu0 0.0
    %452 = vmatprep.subr.mxu0 0.0
    %453 = vmatpush1.msra.mxu0 0.0
    %454 = vmatprep.subr.mxu0 0.0
    %455 = vmatpush1.msra.mxu0 0.0
    %456 = vmatprep.subr.mxu0 0.0
    %457 = vmatpush1.msra.mxu0 0.0
    %458 = vmatprep.subr.mxu0 0.0
    %459 = vmatpush1.msra.mxu0 0.0
    %460 = vmatprep.subr.mxu0 0.0
    %461 = vmatpush1.msra.mxu0 0.0
    %462 = vmatprep.subr.mxu0 0.0
    %463 = vmatpush1.msra.mxu0 0.0
    %464 = vmatprep.subr.mxu0 0.0
    %465 = vmatpush1.msra.mxu0 0.0
    %466 = vmatprep.subr.mxu0 0.0
    %467 = vmatpush1.msra.mxu0 0.0
    %468 = vmatprep.subr.mxu0 0.0
    %469 = vmatpush1.msra.mxu0 0.0
    %470 = vmatprep.subr.mxu0 0.0
    %471 = vmatpush1.msra.mxu0 0.0
    %472 = vmatprep.subr.mxu0 0.0
    %473 = vmatpush1.msra.mxu0 0.0
    %474 = vmatprep.subr.mxu0 0.0
    %475 = vmatpush1.msra.mxu0 0.0
    %476 = vmatprep.subr.mxu0 0.0
    %477 = vmatpush1.msra.mxu0 0.0
    %478 = vmatprep.subr.mxu0 0.0
    %479 = vmatpush1.msra.mxu0 0.0
    %480 = vmatprep.subr.mxu0 0.0
    %481 = vmatpush1.msra.mxu0 0.0
    %482 = vmatprep.subr.mxu0 0.0
    %483 = vmatpush1.msra.mxu0 0.0
    %484 = vmatprep.mubr.f32.mxu0 0.0
    %485 = vmatmul.mubr.f32.gmra.mrb[0].mxu0 %v337
    %v486 = vpop.f32.mrb[0].mxu0
    %v487 = vadd.f32 0.5, %v486
    %v488 = vpop.f32.mrb[0].mxu0
    %v489 = vadd.f32 0.5, %v488
    %490 = vmatprep.mubr.f32.mxu0 0.0
    %491 = vmatmul.mubr.f32.gmra.mrb[0].mxu0 %v340
    %v492 = vpop.f32.mrb[0].mxu0
    %v493 = vadd.f32 0.5, %v492
    %v494 = vpop.f32.mrb[0].mxu0
    %v495 = vadd.f32 0.5, %v494
    %496 = vmatprep.mubr.f32.mxu0 0.0
    %497 = vmatmul.mubr.f32.gmra.mrb[0].mxu0 %v343
    %v498 = vpop.f32.mrb[0].mxu0
    %v499 = vadd.f32 0.5, %v498
    %v500 = vpop.f32.mrb[0].mxu0
    %v501 = vadd.f32 0.5, %v500
    %502 = vmatprep.mubr.f32.mxu0 0.0
    %503 = vmatmul.mubr.f32.gmra.mrb[0].mxu0 %v346
    %v504 = vpop.f32.mrb[0].mxu0
    %v505 = vadd.f32 0.5, %v504
    %v506 = vpop.f32.mrb[0].mxu0
    %v507 = vadd.f32 0.5, %v506
    %508 = vmatprep.mubr.f32.mxu0 0.0
    %509 = vmatmul.mubr.f32.gmra.mrb[0].mxu0 %v349
    %v510 = vpop.f32.mrb[0].mxu0
    %v511 = vadd.f32 0.5, %v510
    %v512 = vpop.f32.mrb[0].mxu0
    %v513 = vadd.f32 0.5, %v512
    %514 = vmatprep.mubr.f32.mxu0 0.0
    %515 = vmatmul.mubr.f32.gmra.mrb[0].mxu0 %v352
    %v516 = vpop.f32.mrb[0].mxu0
    %v517 = vadd.f32 0.5, %v516
    %v518 = vpop.f32.mrb[0].mxu0
    %v519 = vadd.f32 0.5, %v518
    %520 = vmatprep.mubr.f32.mxu0 0.0
    %521 = vmatmul.mubr.f32.gmra.mrb[0].mxu0 %v355
    %v522 = vpop.f32.mrb[0].mxu0
    %v523 = vadd.f32 0.5, %v522
    %v524 = vpop.f32.mrb[0].mxu0
    %v525 = vadd.f32 0.5, %v524
    %526 = vmatprep.mubr.f32.mxu0 0.0
    %527 = vmatmul.mubr.f32.gmra.mrb[0].mxu0 %v358
    %v528 = vpop.f32.mrb[0].mxu0
    %v529 = vadd.f32 0.5, %v528
    %v530 = vpop.f32.mrb[0].mxu0
    %v531 = vadd.f32 0.5, %v530
    %532 = vmatprep.mubr.f32.mxu0 0.0
    %533 = vmatmul.mubr.f32.gmra.mrb[0].mxu0 %v361
    %v534 = vpop.f32.mrb[0].mxu0
    %v535 = vadd.f32 0.5, %v534
    %v536 = vpop.f32.mrb[0].mxu0
    %v537 = vadd.f32 0.5, %v536
    %538 = vmatprep.mubr.f32.mxu0 0.0
    %539 = vmatmul.mubr.f32.gmra.mrb[0].mxu0 %v364
    %v540 = vpop.f32.mrb[0].mxu0
    %v541 = vadd.f32 0.5, %v540
    %v542 = vpop.f32.mrb[0].mxu0
    %v543 = vadd.f32 0.5, %v542
    %544 = vmatprep.mubr.f32.mxu0 0.0
    %545 = vmatmul.mubr.f32.gmra.mrb[0].mxu0 %v367
    %v546 = vpop.f32.mrb[0].mxu0
    %v547 = vadd.f32 0.5, %v546
    %v548 = vpop.f32.mrb[0].mxu0
    %v549 = vadd.f32 0.5, %v548
    %550 = vmatprep.mubr.f32.mxu0 0.0
    %551 = vmatmul.mubr.f32.gmra.mrb[0].mxu0 %v370
    %v552 = vpop.f32.mrb[0].mxu0
    %v553 = vadd.f32 0.5, %v552
    %v554 = vpop.f32.mrb[0].mxu0
    %v555 = vadd.f32 0.5, %v554
    %556 = vmatprep.mubr.f32.mxu0 0.0
    %557 = vmatmul.mubr.f32.gmra.mrb[0].mxu0 %v373
    %v558 = vpop.f32.mrb[0].mxu0
    %v559 = vadd.f32 0.5, %v558
    %v560 = vpop.f32.mrb[0].mxu0
    %v561 = vadd.f32 0.5, %v560
    %562 = vmatprep.mubr.f32.mxu0 0.0
    %563 = vmatmul.mubr.f32.gmra.mrb[0].mxu0 %v376
    %v564 = vpop.f32.mrb[0].mxu0
    %v565 = vadd.f32 0.5, %v564
    %v566 = vpop.f32.mrb[0].mxu0
    %v567 = vadd.f32 0.5, %v566
    %568 = vmatprep.mubr.f32.mxu0 0.0
    %569 = vmatmul.mubr.f32.gmra.mrb[0].mxu0 %v379
    %v570 = vpop.f32.mrb[0].mxu0
    %v571 = vadd.f32 0.5, %v570
    %v572 = vpop.f32.mrb[0].mxu0
    %v573 = vadd.f32 0.5, %v572
    %574 = vmatprep.mubr.f32.mxu0 0.0
    %575 = vmatmul.mubr.f32.gmra.mrb[0].mxu0 %v382
    %v576 = vpop.f32.mrb[0].mxu0
    %v577 = vadd.f32 0.5, %v576
    %v578 = vpop.f32.mrb[0].mxu0
    %v579 = vadd.f32 0.5, %v578
    %580 = vmatprep.mubr.f32.mxu0 0.0
    %581 = vmatmul.mubr.f32.gmra.mrb[0].mxu0 %v385
    %v582 = vpop.f32.mrb[0].mxu0
    %v583 = vadd.f32 0.5, %v582
    %v584 = vpop.f32.mrb[0].mxu0
    %v585 = vadd.f32 0.5, %v584
    %586 = vmatprep.mubr.f32.mxu0 0.0
    %587 = vmatmul.mubr.f32.gmra.mrb[0].mxu0 %v388
    %v588 = vpop.f32.mrb[0].mxu0
    %v589 = vadd.f32 0.5, %v588
    %v590 = vpop.f32.mrb[0].mxu0
    %v591 = vadd.f32 0.5, %v590
    %592 = vmatprep.mubr.f32.mxu0 0.0
    %593 = vmatmul.mubr.f32.gmra.mrb[0].mxu0 %v391
    %v594 = vpop.f32.mrb[0].mxu0
    %v595 = vadd.f32 0.5, %v594
    %v596 = vpop.f32.mrb[0].mxu0
    %v597 = vadd.f32 0.5, %v596
    %598 = vmatprep.mubr.f32.mxu0 0.0
    %599 = vmatmul.mubr.f32.gmra.mrb[0].mxu0 %v394
    %v600 = vpop.f32.mrb[0].mxu0
    %v601 = vadd.f32 0.5, %v600
    %v602 = vpop.f32.mrb[0].mxu0
    %v603 = vadd.f32 0.5, %v602
    %604 = vmatprep.mubr.f32.mxu0 0.0
    %605 = vmatmul.mubr.f32.gmra.mrb[0].mxu0 %v397
    %v606 = vpop.f32.mrb[0].mxu0
    %v607 = vadd.f32 0.5, %v606
    %v608 = vpop.f32.mrb[0].mxu0
    %v609 = vadd.f32 0.5, %v608
    %610 = vmatprep.mubr.f32.mxu0 0.0
    %611 = vmatmul.mubr.f32.gmra.mrb[0].mxu0 %v400
    %v612 = vpop.f32.mrb[0].mxu0
    %v613 = vadd.f32 0.5, %v612
    %v614 = vpop.f32.mrb[0].mxu0
    %v615 = vadd.f32 0.5, %v614
    %616 = vmatprep.mubr.f32.mxu0 0.0
    %617 = vmatmul.mubr.f32.gmra.mrb[0].mxu0 %v403
    %v618 = vpop.f32.mrb[0].mxu0
    %v619 = vadd.f32 0.5, %v618
    %v620 = vpop.f32.mrb[0].mxu0
    %v621 = vadd.f32 0.5, %v620
    %622 = vmatprep.mubr.f32.mxu0 0.0
    %623 = vmatmul.mubr.f32.gmra.mrb[0].mxu0 %v406
    %v624 = vpop.f32.mrb[0].mxu0
    %v625 = vadd.f32 0.5, %v624
    %v626 = vpop.f32.mrb[0].mxu0
    %v627 = vadd.f32 0.5, %v626
    %628 = vmatprep.mubr.f32.mxu0 0.0
    %629 = vmatmul.mubr.f32.gmra.mrb[0].mxu0 %v409
    %v630 = vpop.f32.mrb[0].mxu0
    %v631 = vadd.f32 0.5, %v630
    %v632 = vpop.f32.mrb[0].mxu0
    %v633 = vadd.f32 0.5, %v632
    %634 = vmatprep.mubr.f32.mxu0 0.0
    %635 = vmatmul.mubr.f32.gmra.mrb[0].mxu0 %v412
    %v636 = vpop.f32.mrb[0].mxu0
    %v637 = vadd.f32 0.5, %v636
    %v638 = vpop.f32.mrb[0].mxu0
    %v639 = vadd.f32 0.5, %v638
    %640 = vmatprep.mubr.f32.mxu0 0.0
    %641 = vmatmul.mubr.f32.gmra.mrb[0].mxu0 %v415
    %v642 = vpop.f32.mrb[0].mxu0
    %v643 = vadd.f32 0.5, %v642
    %v644 = vpop.f32.mrb[0].mxu0
    %v645 = vadd.f32 0.5, %v644
    %646 = vmatprep.mubr.f32.mxu0 0.0
    %647 = vmatmul.mubr.f32.gmra.mrb[0].mxu0 %v418
    %v648 = vpop.f32.mrb[0].mxu0
    %v649 = vadd.f32 0.5, %v648
    %v650 = vpop.f32.mrb[0].mxu0
    %v651 = vadd.f32 0.5, %v650
    %652 = vdwg.mxu0
    %v653 = vfloor.f32 %v487
    %v654 = vfloor.f32 %v489
    %v655 = vfloor.f32 %v493
    %v656 = vfloor.f32 %v495
    %v657 = vfloor.f32 %v499
    %v658 = vfloor.f32 %v501
    %v659 = vfloor.f32 %v505
    %v660 = vfloor.f32 %v507
    %v661 = vfloor.f32 %v511
    %v662 = vfloor.f32 %v513
    %v663 = vfloor.f32 %v517
    %v664 = vfloor.f32 %v519
    %v665 = vfloor.f32 %v523
    %v666 = vfloor.f32 %v525
    %v667 = vfloor.f32 %v529
    %v668 = vfloor.f32 %v531
    %v669 = vfloor.f32 %v535
    %v670 = vfloor.f32 %v537
    %v671 = vfloor.f32 %v541
    %v672 = vfloor.f32 %v543
    %v673 = vfloor.f32 %v547
    %v674 = vfloor.f32 %v549
    %v675 = vfloor.f32 %v553
    %v676 = vfloor.f32 %v555
    %v677 = vfloor.f32 %v559
    %v678 = vfloor.f32 %v561
    %v679 = vfloor.f32 %v565
    %v680 = vfloor.f32 %v567
    %v681 = vfloor.f32 %v571
    %v682 = vfloor.f32 %v573
    %v683 = vfloor.f32 %v577
    %v684 = vfloor.f32 %v579
    %v685 = vfloor.f32 %v583
    %v686 = vfloor.f32 %v585
    %v687 = vfloor.f32 %v589
    %v688 = vfloor.f32 %v591
    %v689 = vfloor.f32 %v595
    %v690 = vfloor.f32 %v597
    %v691 = vfloor.f32 %v601
    %v692 = vfloor.f32 %v603
    %v693 = vfloor.f32 %v607
    %v694 = vfloor.f32 %v609
    %v695 = vfloor.f32 %v613
    %v696 = vfloor.f32 %v615
    %v697 = vfloor.f32 %v619
    %v698 = vfloor.f32 %v621
    %v699 = vfloor.f32 %v625
    %v700 = vfloor.f32 %v627
    %v701 = vfloor.f32 %v631
    %v702 = vfloor.f32 %v633
    %v703 = vfloor.f32 %v637
    %v704 = vfloor.f32 %v639
    %v705 = vfloor.f32 %v643
    %v706 = vfloor.f32 %v645
    %v707 = vfloor.f32 %v649
    %v708 = vfloor.f32 %v651
    %v709 = vmax.f32 %v653, 0.0
    %v710 = vmax.f32 %v654, 0.0
    %v711 = vmax.f32 %v655, 0.0
    %v712 = vmax.f32 %v656, 0.0
    %v713 = vmax.f32 %v657, 0.0
    %v714 = vmax.f32 %v658, 0.0
    %v715 = vmax.f32 %v659, 0.0
    %v716 = vmax.f32 %v660, 0.0
    %v717 = vmax.f32 %v661, 0.0
    %v718 = vmax.f32 %v662, 0.0
    %v719 = vmax.f32 %v663, 0.0
    %v720 = vmax.f32 %v664, 0.0
    %v721 = vmax.f32 %v665, 0.0
    %v722 = vmax.f32 %v666, 0.0
    %v723 = vmax.f32 %v667, 0.0
    %v724 = vmax.f32 %v668, 0.0
    %v725 = vmax.f32 %v669, 0.0
    %v726 = vmax.f32 %v670, 0.0
    %v727 = vmax.f32 %v671, 0.0
    %v728 = vmax.f32 %v672, 0.0
    %v729 = vmax.f32 %v673, 0.0
    %v730 = vmax.f32 %v674, 0.0
    %v731 = vmax.f32 %v675, 0.0
    %v732 = vmax.f32 %v676, 0.0
    %v733 = vmax.f32 %v677, 0.0
    %v734 = vmax.f32 %v678, 0.0
    %v735 = vmax.f32 %v679, 0.0
    %v736 = vmax.f32 %v680, 0.0
    %v737 = vmax.f32 %v681, 0.0
    %v738 = vmax.f32 %v682, 0.0
    %v739 = vmax.f32 %v683, 0.0
    %v740 = vmax.f32 %v684, 0.0
    %v741 = vmax.f32 %v685, 0.0
    %v742 = vmax.f32 %v686, 0.0
    %v743 = vmax.f32 %v687, 0.0
    %v744 = vmax.f32 %v688, 0.0
    %v745 = vmax.f32 %v689, 0.0
    %v746 = vmax.f32 %v690, 0.0
    %v747 = vmax.f32 %v691, 0.0
    %v748 = vmax.f32 %v692, 0.0
    %v749 = vmax.f32 %v693, 0.0
    %v750 = vmax.f32 %v694, 0.0
    %v751 = vmax.f32 %v695, 0.0
    %v752 = vmax.f32 %v696, 0.0
    %v753 = vmax.f32 %v697, 0.0
    %v754 = vmax.f32 %v698, 0.0
    %v755 = vmax.f32 %v699, 0.0
    %v756 = vmax.f32 %v700, 0.0
    %v757 = vmax.f32 %v701, 0.0
    %v758 = vmax.f32 %v702, 0.0
    %v759 = vmax.f32 %v703, 0.0
    %v760 = vmax.f32 %v704, 0.0
    %v761 = vmax.f32 %v705, 0.0
    %v762 = vmax.f32 %v706, 0.0
    %v763 = vmax.f32 %v707, 0.0
    %v764 = vmax.f32 %v708, 0.0
    %v765 = vmin.f32 %v709, 255.0
    %v766 = vmin.f32 %v710, 255.0
    %v767 = vmin.f32 %v711, 255.0
    %v768 = vmin.f32 %v712, 255.0
    %v769 = vmin.f32 %v713, 255.0
    %v770 = vmin.f32 %v714, 255.0
    %v771 = vmin.f32 %v715, 255.0
    %v772 = vmin.f32 %v716, 255.0
    %v773 = vmin.f32 %v717, 255.0
    %v774 = vmin.f32 %v718, 255.0
    %v775 = vmin.f32 %v719, 255.0
    %v776 = vmin.f32 %v720, 255.0
    %v777 = vmin.f32 %v721, 255.0
    %v778 = vmin.f32 %v722, 255.0
    %v779 = vmin.f32 %v723, 255.0
    %v780 = vmin.f32 %v724, 255.0
    %v781 = vmin.f32 %v725, 255.0
    %v782 = vmin.f32 %v726, 255.0
    %v783 = vmin.f32 %v727, 255.0
    %v784 = vmin.f32 %v728, 255.0
    %v785 = vmin.f32 %v729, 255.0
    %v786 = vmin.f32 %v730, 255.0
    %v787 = vmin.f32 %v731, 255.0
    %v788 = vmin.f32 %v732, 255.0
    %v789 = vmin.f32 %v733, 255.0
    %v790 = vmin.f32 %v734, 255.0
    %v791 = vmin.f32 %v735, 255.0
    %v792 = vmin.f32 %v736, 255.0
    %v793 = vmin.f32 %v737, 255.0
    %v794 = vmin.f32 %v738, 255.0
    %v795 = vmin.f32 %v739, 255.0
    %v796 = vmin.f32 %v740, 255.0
    %v797 = vmin.f32 %v741, 255.0
    %v798 = vmin.f32 %v742, 255.0
    %v799 = vmin.f32 %v743, 255.0
    %v800 = vmin.f32 %v744, 255.0
    %v801 = vmin.f32 %v745, 255.0
    %v802 = vmin.f32 %v746, 255.0
    %v803 = vmin.f32 %v747, 255.0
    %v804 = vmin.f32 %v748, 255.0
    %v805 = vmin.f32 %v749, 255.0
    %v806 = vmin.f32 %v750, 255.0
    %v807 = vmin.f32 %v751, 255.0
    %v808 = vmin.f32 %v752, 255.0
    %v809 = vmin.f32 %v753, 255.0
    %v810 = vmin.f32 %v754, 255.0
    %v811 = vmin.f32 %v755, 255.0
    %v812 = vmin.f32 %v756, 255.0
    %v813 = vmin.f32 %v757, 255.0
    %v814 = vmin.f32 %v758, 255.0
    %v815 = vmin.f32 %v759, 255.0
    %v816 = vmin.f32 %v760, 255.0
    %v817 = vmin.f32 %v761, 255.0
    %v818 = vmin.f32 %v762, 255.0
    %v819 = vmin.f32 %v763, 255.0
    %v820 = vmin.f32 %v764, 255.0
    %v821 = vmul.f32 %v765, 0.007843138
    %v822 = vmul.f32 %v766, 0.007843138
    %v823 = vmul.f32 %v767, 0.007843138
    %v824 = vmul.f32 %v768, 0.007843138
    %v825 = vmul.f32 %v769, 0.007843138
    %v826 = vmul.f32 %v770, 0.007843138
    %v827 = vmul.f32 %v771, 0.007843138
    %v828 = vmul.f32 %v772, 0.007843138
    %v829 = vmul.f32 %v773, 0.007843138
    %v830 = vmul.f32 %v774, 0.007843138
    %v831 = vmul.f32 %v775, 0.007843138
    %v832 = vmul.f32 %v776, 0.007843138
    %v833 = vmul.f32 %v777, 0.007843138
    %v834 = vmul.f32 %v778, 0.007843138
    %v835 = vmul.f32 %v779, 0.007843138
    %v836 = vmul.f32 %v780, 0.007843138
    %v837 = vmul.f32 %v781, 0.007843138
    %v838 = vmul.f32 %v782, 0.007843138
    %v839 = vmul.f32 %v783, 0.007843138
    %v840 = vmul.f32 %v784, 0.007843138
    %v841 = vmul.f32 %v785, 0.007843138
    %v842 = vmul.f32 %v786, 0.007843138
    %v843 = vmul.f32 %v787, 0.007843138
    %v844 = vmul.f32 %v788, 0.007843138
    %v845 = vmul.f32 %v789, 0.007843138
    %v846 = vmul.f32 %v790, 0.007843138
    %v847 = vmul.f32 %v791, 0.007843138
    %v848 = vmul.f32 %v792, 0.007843138
    %v849 = vmul.f32 %v793, 0.007843138
    %v850 = vmul.f32 %v794, 0.007843138
    %v851 = vmul.f32 %v795, 0.007843138
    %v852 = vmul.f32 %v796, 0.007843138
    %v853 = vmul.f32 %v797, 0.007843138
    %v854 = vmul.f32 %v798, 0.007843138
    %v855 = vmul.f32 %v799, 0.007843138
    %v856 = vmul.f32 %v800, 0.007843138
    %v857 = vmul.f32 %v801, 0.007843138
    %v858 = vmul.f32 %v802, 0.007843138
    %v859 = vmul.f32 %v803, 0.007843138
    %v860 = vmul.f32 %v804, 0.007843138
    %v861 = vmul.f32 %v805, 0.007843138
    %v862 = vmul.f32 %v806, 0.007843138
    %v863 = vmul.f32 %v807, 0.007843138
    %v864 = vmul.f32 %v808, 0.007843138
    %v865 = vmul.f32 %v809, 0.007843138
    %v866 = vmul.f32 %v810, 0.007843138
    %v867 = vmul.f32 %v811, 0.007843138
    %v868 = vmul.f32 %v812, 0.007843138
    %v869 = vmul.f32 %v813, 0.007843138
    %v870 = vmul.f32 %v814, 0.007843138
    %v871 = vmul.f32 %v815, 0.007843138
    %v872 = vmul.f32 %v816, 0.007843138
    %v873 = vmul.f32 %v817, 0.007843138
    %v874 = vmul.f32 %v818, 0.007843138
    %v875 = vmul.f32 %v819, 0.007843138
    %v876 = vmul.f32 %v820, 0.007843138
    %v877 = vsub.f32 %v821, 1.0
    %v878 = vsub.f32 %v822, 1.0
    %v879 = vsub.f32 %v823, 1.0
    %v880 = vsub.f32 %v824, 1.0
    %v881 = vsub.f32 %v825, 1.0
    %v882 = vsub.f32 %v826, 1.0
    %v883 = vsub.f32 %v827, 1.0
    %v884 = vsub.f32 %v828, 1.0
    %v885 = vsub.f32 %v829, 1.0
    %v886 = vsub.f32 %v830, 1.0
    %v887 = vsub.f32 %v831, 1.0
    %v888 = vsub.f32 %v832, 1.0
    %v889 = vsub.f32 %v833, 1.0
    %v890 = vsub.f32 %v834, 1.0
    %v891 = vsub.f32 %v835, 1.0
    %v892 = vsub.f32 %v836, 1.0
    %v893 = vsub.f32 %v837, 1.0
    %v894 = vsub.f32 %v838, 1.0
    %v895 = vsub.f32 %v839, 1.0
    %v896 = vsub.f32 %v840, 1.0
    %v897 = vsub.f32 %v841, 1.0
    %v898 = vsub.f32 %v842, 1.0
    %v899 = vsub.f32 %v843, 1.0
    %v900 = vsub.f32 %v844, 1.0
    %v901 = vsub.f32 %v845, 1.0
    %v902 = vsub.f32 %v846, 1.0
    %v903 = vsub.f32 %v847, 1.0
    %v904 = vsub.f32 %v848, 1.0
    %v905 = vsub.f32 %v849, 1.0
    %v906 = vsub.f32 %v850, 1.0
    %v907 = vsub.f32 %v851, 1.0
    %v908 = vsub.f32 %v852, 1.0
    %v909 = vsub.f32 %v853, 1.0
    %v910 = vsub.f32 %v854, 1.0
    %v911 = vsub.f32 %v855, 1.0
    %v912 = vsub.f32 %v856, 1.0
    %v913 = vsub.f32 %v857, 1.0
    %v914 = vsub.f32 %v858, 1.0
    %v915 = vsub.f32 %v859, 1.0
    %v916 = vsub.f32 %v860, 1.0
    %v917 = vsub.f32 %v861, 1.0
    %v918 = vsub.f32 %v862, 1.0
    %v919 = vsub.f32 %v863, 1.0
    %v920 = vsub.f32 %v864, 1.0
    %v921 = vsub.f32 %v865, 1.0
    %v922 = vsub.f32 %v866, 1.0
    %v923 = vsub.f32 %v867, 1.0
    %v924 = vsub.f32 %v868, 1.0
    %v925 = vsub.f32 %v869, 1.0
    %v926 = vsub.f32 %v870, 1.0
    %v927 = vsub.f32 %v871, 1.0
    %v928 = vsub.f32 %v872, 1.0
    %v929 = vsub.f32 %v873, 1.0
    %v930 = vsub.f32 %v874, 1.0
    %v931 = vsub.f32 %v875, 1.0
    %v932 = vsub.f32 %v876, 1.0
    %933 = vst [vmem:[#allocation2] sm:$0xff] %v877
    %vm934 = vcmask 785408
    %935 = vst.msk [vmem:[#allocation2 + $0x8] sm:$0xff] %vm934, %v878
    %936 = vst [vmem:[#allocation2 + $0x10] sm:$0xff] %v879
    %937 = vst.msk [vmem:[#allocation2 + $0x18] sm:$0xff] %vm934, %v880
    %938 = vst [vmem:[#allocation2 + $0x20] sm:$0xff] %v881
    %939 = vst.msk [vmem:[#allocation2 + $0x28] sm:$0xff] %vm934, %v882
    %940 = vst [vmem:[#allocation2 + $0x30] sm:$0xff] %v883
    %941 = vst.msk [vmem:[#allocation2 + $0x38] sm:$0xff] %vm934, %v884
    %942 = vst [vmem:[#allocation2 + $0x40] sm:$0xff] %v885
    %943 = vst.msk [vmem:[#allocation2 + $0x48] sm:$0xff] %vm934, %v886
    %944 = vst [vmem:[#allocation2 + $0x50] sm:$0xff] %v887
    %945 = vst.msk [vmem:[#allocation2 + $0x58] sm:$0xff] %vm934, %v888
    %946 = vst [vmem:[#allocation2 + $0x60] sm:$0xff] %v889
    %947 = vst.msk [vmem:[#allocation2 + $0x68] sm:$0xff] %vm934, %v890
    %948 = vst [vmem:[#allocation2 + $0x70] sm:$0xff] %v891
    %949 = vst.msk [vmem:[#allocation2 + $0x78] sm:$0xff] %vm934, %v892
    %950 = vst [vmem:[#allocation2 + $0x80] sm:$0xff] %v893
    %951 = vst.msk [vmem:[#allocation2 + $0x88] sm:$0xff] %vm934, %v894
    %952 = vst [vmem:[#allocation2 + $0x90] sm:$0xff] %v895
    %953 = vst.msk [vmem:[#allocation2 + $0x98] sm:$0xff] %vm934, %v896
    %954 = vst [vmem:[#allocation2 + $0xa0] sm:$0xff] %v897
    %955 = vst.msk [vmem:[#allocation2 + $0xa8] sm:$0xff] %vm934, %v898
    %956 = vst [vmem:[#allocation2 + $0xb0] sm:$0xff] %v899
    %957 = vst.msk [vmem:[#allocation2 + $0xb8] sm:$0xff] %vm934, %v900
    %958 = vst [vmem:[#allocation2 + $0xc0] sm:$0xff] %v901
    %959 = vst.msk [vmem:[#allocation2 + $0xc8] sm:$0xff] %vm934, %v902
    %960 = vst [vmem:[#allocation2 + $0xd0] sm:$0xff] %v903
    %961 = vst.msk [vmem:[#allocation2 + $0xd8] sm:$0xff] %vm934, %v904
    %962 = vst [vmem:[#allocation2 + $0xe0] sm:$0xff] %v905
    %963 = vst.msk [vmem:[#allocation2 + $0xe8] sm:$0xff] %vm934, %v906
    %964 = vst [vmem:[#allocation2 + $0xf0] sm:$0xff] %v907
    %965 = vst.msk [vmem:[#allocation2 + $0xf8] sm:$0xff] %vm934, %v908
    %966 = vst [vmem:[#allocation2 + $0x100] sm:$0xff] %v909
    %967 = vst.msk [vmem:[#allocation2 + $0x108] sm:$0xff] %vm934, %v910
    %968 = vst [vmem:[#allocation2 + $0x110] sm:$0xff] %v911
    %969 = vst.msk [vmem:[#allocation2 + $0x118] sm:$0xff] %vm934, %v912
    %970 = vst [vmem:[#allocation2 + $0x120] sm:$0xff] %v913
    %971 = vst.msk [vmem:[#allocation2 + $0x128] sm:$0xff] %vm934, %v914
    %972 = vst [vmem:[#allocation2 + $0x130] sm:$0xff] %v915
    %973 = vst.msk [vmem:[#allocation2 + $0x138] sm:$0xff] %vm934, %v916
    %974 = vst [vmem:[#allocation2 + $0x140] sm:$0xff] %v917
    %975 = vst.msk [vmem:[#allocation2 + $0x148] sm:$0xff] %vm934, %v918
    %976 = vst [vmem:[#allocation2 + $0x150] sm:$0xff] %v919
    %977 = vst.msk [vmem:[#allocation2 + $0x158] sm:$0xff] %vm934, %v920
    %978 = vst [vmem:[#allocation2 + $0x160] sm:$0xff] %v921
    %979 = vst.msk [vmem:[#allocation2 + $0x168] sm:$0xff] %vm934, %v922
    %980 = vst [vmem:[#allocation2 + $0x170] sm:$0xff] %v923
    %981 = vst.msk [vmem:[#allocation2 + $0x178] sm:$0xff] %vm934, %v924
    %982 = vst [vmem:[#allocation2 + $0x180] sm:$0xff] %v925
    %983 = vst.msk [vmem:[#allocation2 + $0x188] sm:$0xff] %vm934, %v926
    %984 = vst [vmem:[#allocation2 + $0x190] sm:$0xff] %v927
    %985 = vst.msk [vmem:[#allocation2 + $0x198] sm:$0xff] %vm934, %v928
    %986 = vst [vmem:[#allocation2 + $0x1a0] sm:$0xff] %v929
    %987 = vst.msk [vmem:[#allocation2 + $0x1a8] sm:$0xff] %vm934, %v930
    %988 = vst [vmem:[#allocation2 + $0x1b0] sm:$0xff] %v931
    %989 = vst.msk [vmem:[#allocation2 + $0x1b8] sm:$0xff] %vm934, %v932
    %s990 = scalar_lea.vmem %s0, 4
    %v991 = vld [vmem:[%s990] sm:$0x3]
    %v992 = vld [vmem:[%s990 + $0x2] sm:$0x3]
    %v993 = vunpack.c.0.s8 %v991
    %v994 = vunpack.c.0.s8 %v992
    %v995 = vand.u32 %v993, 255
    %v996 = vand.u32 %v994, 255
    %v997 = vcvt.s32.f32 %v995
    %v998 = vcvt.s32.f32 %v996
    %v999 = vmul.f32 %v997, %v53
    %v1000 = vmul.f32 %v998, %v54
    %v1001 = vadd.f32 %v999, %v57
    %v1002 = vadd.f32 %v1000, %v58
    %v1003 = vfloor.f32 %v1001
    %v1004 = vfloor.f32 %v1002
    %v1005 = vpack.c.bf16 %v1004, %v1003
    %1006 = vmatprep.subr.bf16.mxu0 0
    %1007 = vmatpush1.bf16.msra.mxu0 %v1005
    %1008 = vmatprep.subr.bf16.mxu0 0
    %1009 = vmatpush1.bf16.msra.mxu0 0
    %1010 = vmatprep.subr.bf16.mxu0 0
    %1011 = vmatpush1.bf16.msra.mxu0 0
    %1012 = vmatprep.subr.bf16.mxu0 0
    %1013 = vmatpush1.bf16.msra.mxu0 0
    %1014 = vmatprep.subr.bf16.mxu0 0
    %1015 = vmatpush1.bf16.msra.mxu0 0
    %1016 = vmatprep.subr.bf16.mxu0 0
    %1017 = vmatpush1.bf16.msra.mxu0 0
    %1018 = vmatprep.subr.bf16.mxu0 0
    %1019 = vmatpush1.bf16.msra.mxu0 0
    %1020 = vmatprep.subr.bf16.mxu0 0
    %1021 = vmatpush1.bf16.msra.mxu0 0
    %1022 = vmatprep.subr.bf16.mxu0 0
    %1023 = vmatpush1.bf16.msra.mxu0 0
    %1024 = vmatprep.subr.bf16.mxu0 0
    %1025 = vmatpush1.bf16.msra.mxu0 0
    %1026 = vmatprep.subr.bf16.mxu0 0
    %1027 = vmatpush1.bf16.msra.mxu0 0
    %1028 = vmatprep.subr.bf16.mxu0 0
    %1029 = vmatpush1.bf16.msra.mxu0 0
    %1030 = vmatprep.subr.bf16.mxu0 0
    %1031 = vmatpush1.bf16.msra.mxu0 0
    %1032 = vmatprep.subr.bf16.mxu0 0
    %1033 = vmatpush1.bf16.msra.mxu0 0
    %1034 = vmatprep.subr.bf16.mxu0 0
    %1035 = vmatpush1.bf16.msra.mxu0 0
    %1036 = vmatprep.subr.bf16.mxu0 0
    %1037 = vmatpush1.bf16.msra.mxu0 0
    %1038 = vmatprep.mubr.bf16.mxu0 0
    %1039 = vmatmul.mubr.bf16.gmra.mrb[0].mxu0 %v150
    %v1040 = vpop.f32.mrb[0].mxu0
    %v1041 = vadd.f32 0.0, %v1040
    %v1042 = vpop.f32.mrb[0].mxu0
    %v1043 = vpop.f32.mrb[0].mxu0
    %v1044 = vadd.f32 0.0, %v1043
    %v1045 = vpop.f32.mrb[0].mxu0
    %1046 = vmatprep.mubr.bf16.mxu0 0
    %1047 = vmatmul.mubr.bf16.gmra.mrb[0].mxu0 %v153
    %v1048 = vpop.f32.mrb[0].mxu0
    %v1049 = vadd.f32 0.0, %v1048
    %v1050 = vpop.f32.mrb[0].mxu0
    %v1051 = vpop.f32.mrb[0].mxu0
    %v1052 = vadd.f32 0.0, %v1051
    %v1053 = vpop.f32.mrb[0].mxu0
    %1054 = vmatprep.mubr.bf16.mxu0 0
    %1055 = vmatmul.mubr.bf16.gmra.mrb[0].mxu0 %v156
    %v1056 = vpop.f32.mrb[0].mxu0
    %v1057 = vadd.f32 0.0, %v1056
    %v1058 = vpop.f32.mrb[0].mxu0
    %v1059 = vpop.f32.mrb[0].mxu0
    %v1060 = vadd.f32 0.0, %v1059
    %v1061 = vpop.f32.mrb[0].mxu0
    %1062 = vmatprep.mubr.bf16.mxu0 0
    %1063 = vmatmul.mubr.bf16.gmra.mrb[0].mxu0 %v159
    %v1064 = vpop.f32.mrb[0].mxu0
    %v1065 = vadd.f32 0.0, %v1064
    %v1066 = vpop.f32.mrb[0].mxu0
    %v1067 = vpop.f32.mrb[0].mxu0
    %v1068 = vadd.f32 0.0, %v1067
    %v1069 = vpop.f32.mrb[0].mxu0
    %1070 = vmatprep.mubr.bf16.mxu0 0
    %1071 = vmatmul.mubr.bf16.gmra.mrb[0].mxu0 %v162
    %v1072 = vpop.f32.mrb[0].mxu0
    %v1073 = vadd.f32 0.0, %v1072
    %v1074 = vpop.f32.mrb[0].mxu0
    %v1075 = vpop.f32.mrb[0].mxu0
    %v1076 = vadd.f32 0.0, %v1075
    %v1077 = vpop.f32.mrb[0].mxu0
    %1078 = vmatprep.mubr.bf16.mxu0 0
    %1079 = vmatmul.mubr.bf16.gmra.mrb[0].mxu0 %v165
    %v1080 = vpop.f32.mrb[0].mxu0
    %v1081 = vadd.f32 0.0, %v1080
    %v1082 = vpop.f32.mrb[0].mxu0
    %v1083 = vpop.f32.mrb[0].mxu0
    %v1084 = vadd.f32 0.0, %v1083
    %v1085 = vpop.f32.mrb[0].mxu0
    %1086 = vmatprep.mubr.bf16.mxu0 0
    %1087 = vmatmul.mubr.bf16.gmra.mrb[0].mxu0 %v168
    %v1088 = vpop.f32.mrb[0].mxu0
    %v1089 = vadd.f32 0.0, %v1088
    %v1090 = vpop.f32.mrb[0].mxu0
    %v1091 = vpop.f32.mrb[0].mxu0
    %v1092 = vadd.f32 0.0, %v1091
    %v1093 = vpop.f32.mrb[0].mxu0
    %1094 = vmatprep.mubr.bf16.mxu0 0
    %1095 = vmatmul.mubr.bf16.gmra.mrb[0].mxu0 %v171
    %v1096 = vpop.f32.mrb[0].mxu0
    %v1097 = vadd.f32 0.0, %v1096
    %v1098 = vpop.f32.mrb[0].mxu0
    %v1099 = vpop.f32.mrb[0].mxu0
    %v1100 = vadd.f32 0.0, %v1099
    %v1101 = vpop.f32.mrb[0].mxu0
    %1102 = vmatprep.mubr.bf16.mxu0 0
    %1103 = vmatmul.mubr.bf16.gmra.mrb[0].mxu0 %v174
    %v1104 = vpop.f32.mrb[0].mxu0
    %v1105 = vadd.f32 0.0, %v1104
    %v1106 = vpop.f32.mrb[0].mxu0
    %v1107 = vpop.f32.mrb[0].mxu0
    %v1108 = vadd.f32 0.0, %v1107
    %v1109 = vpop.f32.mrb[0].mxu0
    %1110 = vmatprep.mubr.bf16.mxu0 0
    %1111 = vmatmul.mubr.bf16.gmra.mrb[0].mxu0 %v177
    %v1112 = vpop.f32.mrb[0].mxu0
    %v1113 = vadd.f32 0.0, %v1112
    %v1114 = vpop.f32.mrb[0].mxu0
    %v1115 = vpop.f32.mrb[0].mxu0
    %v1116 = vadd.f32 0.0, %v1115
    %v1117 = vpop.f32.mrb[0].mxu0
    %1118 = vmatprep.mubr.bf16.mxu0 0
    %1119 = vmatmul.mubr.bf16.gmra.mrb[0].mxu0 %v180
    %v1120 = vpop.f32.mrb[0].mxu0
    %v1121 = vadd.f32 0.0, %v1120
    %v1122 = vpop.f32.mrb[0].mxu0
    %v1123 = vpop.f32.mrb[0].mxu0
    %v1124 = vadd.f32 0.0, %v1123
    %v1125 = vpop.f32.mrb[0].mxu0
    %1126 = vmatprep.mubr.bf16.mxu0 0
    %1127 = vmatmul.mubr.bf16.gmra.mrb[0].mxu0 %v183
    %v1128 = vpop.f32.mrb[0].mxu0
    %v1129 = vadd.f32 0.0, %v1128
    %v1130 = vpop.f32.mrb[0].mxu0
    %v1131 = vpop.f32.mrb[0].mxu0
    %v1132 = vadd.f32 0.0, %v1131
    %v1133 = vpop.f32.mrb[0].mxu0
    %1134 = vmatprep.mubr.bf16.mxu0 0
    %1135 = vmatmul.mubr.bf16.gmra.mrb[0].mxu0 %v186
    %v1136 = vpop.f32.mrb[0].mxu0
    %v1137 = vadd.f32 0.0, %v1136
    %v1138 = vpop.f32.mrb[0].mxu0
    %v1139 = vpop.f32.mrb[0].mxu0
    %v1140 = vadd.f32 0.0, %v1139
    %v1141 = vpop.f32.mrb[0].mxu0
    %1142 = vmatprep.mubr.bf16.mxu0 0
    %1143 = vmatmul.mubr.bf16.gmra.mrb[0].mxu0 %v189
    %v1144 = vpop.f32.mrb[0].mxu0
    %v1145 = vadd.f32 0.0, %v1144
    %v1146 = vpop.f32.mrb[0].mxu0
    %v1147 = vpop.f32.mrb[0].mxu0
    %v1148 = vadd.f32 0.0, %v1147
    %v1149 = vpop.f32.mrb[0].mxu0
    %1150 = vdwg.mxu0
    %v1152 = vsel %vm148, %v1041, 0
    %v1155 = vsel %vm148, %v1044, 0
    %v1158 = vsel %vm148, %v1049, 0
    %v1161 = vsel %vm148, %v1052, 0
    %v1164 = vsel %vm148, %v1057, 0
    %v1167 = vsel %vm148, %v1060, 0
    %v1170 = vsel %vm148, %v1065, 0
    %v1173 = vsel %vm148, %v1068, 0
    %v1176 = vsel %vm148, %v1073, 0
    %v1179 = vsel %vm148, %v1076, 0
    %v1182 = vsel %vm148, %v1081, 0
    %v1185 = vsel %vm148, %v1084, 0
    %v1188 = vsel %vm148, %v1089, 0
    %v1191 = vsel %vm148, %v1092, 0
    %v1194 = vsel %vm148, %v1097, 0
    %v1197 = vsel %vm148, %v1100, 0
    %v1200 = vsel %vm148, %v1105, 0
    %v1203 = vsel %vm148, %v1108, 0
    %v1206 = vsel %vm148, %v1113, 0
    %v1209 = vsel %vm148, %v1116, 0
    %v1212 = vsel %vm148, %v1121, 0
    %v1215 = vsel %vm148, %v1124, 0
    %v1218 = vsel %vm148, %v1129, 0
    %v1221 = vsel %vm148, %v1132, 0
    %v1224 = vsel %vm148, %v1137, 0
    %v1227 = vsel %vm148, %v1140, 0
    %v1230 = vsel %vm148, %v1145, 0
    %v1233 = vsel %vm148, %v1148, 0
    %1235 = vmatprep.subr.mxu0 %v60
    %1236 = vmatpush1.msra.mxu0 %v59
    %1237 = vmatprep.subr.mxu0 %v62
    %1238 = vmatpush1.msra.mxu0 %v61
    %1239 = vmatprep.subr.mxu0 0.0
    %1240 = vmatpush1.msra.mxu0 0.0
    %1241 = vmatprep.subr.mxu0 0.0
    %1242 = vmatpush1.msra.mxu0 0.0
    %1243 = vmatprep.subr.mxu0 0.0
    %1244 = vmatpush1.msra.mxu0 0.0
    %1245 = vmatprep.subr.mxu0 0.0
    %1246 = vmatpush1.msra.mxu0 0.0
    %1247 = vmatprep.subr.mxu0 0.0
    %1248 = vmatpush1.msra.mxu0 0.0
    %1249 = vmatprep.subr.mxu0 0.0
    %1250 = vmatpush1.msra.mxu0 0.0
    %1251 = vmatprep.subr.mxu0 0.0
    %1252 = vmatpush1.msra.mxu0 0.0
    %1253 = vmatprep.subr.mxu0 0.0
    %1254 = vmatpush1.msra.mxu0 0.0
    %1255 = vmatprep.subr.mxu0 0.0
    %1256 = vmatpush1.msra.mxu0 0.0
    %1257 = vmatprep.subr.mxu0 0.0
    %1258 = vmatpush1.msra.mxu0 0.0
    %1259 = vmatprep.subr.mxu0 0.0
    %1260 = vmatpush1.msra.mxu0 0.0
    %1261 = vmatprep.subr.mxu0 0.0
    %1262 = vmatpush1.msra.mxu0 0.0
    %1263 = vmatprep.subr.mxu0 0.0
    %1264 = vmatpush1.msra.mxu0 0.0
    %1265 = vmatprep.subr.mxu0 0.0
    %1266 = vmatpush1.msra.mxu0 0.0
    %1267 = vmatprep.subr.mxu0 0.0
    %1268 = vmatpush1.msra.mxu0 0.0
    %1269 = vmatprep.subr.mxu0 0.0
    %1270 = vmatpush1.msra.mxu0 0.0
    %1271 = vmatprep.subr.mxu0 0.0
    %1272 = vmatpush1.msra.mxu0 0.0
    %1273 = vmatprep.subr.mxu0 0.0
    %1274 = vmatpush1.msra.mxu0 0.0
    %1275 = vmatprep.subr.mxu0 0.0
    %1276 = vmatpush1.msra.mxu0 0.0
    %1277 = vmatprep.subr.mxu0 0.0
    %1278 = vmatpush1.msra.mxu0 0.0
    %1279 = vmatprep.subr.mxu0 0.0
    %1280 = vmatpush1.msra.mxu0 0.0
    %1281 = vmatprep.subr.mxu0 0.0
    %1282 = vmatpush1.msra.mxu0 0.0
    %1283 = vmatprep.subr.mxu0 0.0
    %1284 = vmatpush1.msra.mxu0 0.0
    %1285 = vmatprep.subr.mxu0 0.0
    %1286 = vmatpush1.msra.mxu0 0.0
    %1287 = vmatprep.subr.mxu0 0.0
    %1288 = vmatpush1.msra.mxu0 0.0
    %1289 = vmatprep.subr.mxu0 0.0
    %1290 = vmatpush1.msra.mxu0 0.0
    %1291 = vmatprep.subr.mxu0 0.0
    %1292 = vmatpush1.msra.mxu0 0.0
    %1293 = vmatprep.subr.mxu0 0.0
    %1294 = vmatpush1.msra.mxu0 0.0
    %1295 = vmatprep.subr.mxu0 0.0
    %1296 = vmatpush1.msra.mxu0 0.0
    %1297 = vmatprep.subr.mxu0 0.0
    %1298 = vmatpush1.msra.mxu0 0.0
    %1299 = vmatprep.mubr.f32.mxu0 0.0
    %1300 = vmatmul.mubr.f32.gmra.mrb[0].mxu0 %v1152
    %v1301 = vpop.f32.mrb[0].mxu0
    %v1302 = vadd.f32 0.5, %v1301
    %v1303 = vpop.f32.mrb[0].mxu0
    %v1304 = vadd.f32 0.5, %v1303
    %1305 = vmatprep.mubr.f32.mxu0 0.0
    %1306 = vmatmul.mubr.f32.gmra.mrb[0].mxu0 %v1155
    %v1307 = vpop.f32.mrb[0].mxu0
    %v1308 = vadd.f32 0.5, %v1307
    %v1309 = vpop.f32.mrb[0].mxu0
    %v1310 = vadd.f32 0.5, %v1309
    %1311 = vmatprep.mubr.f32.mxu0 0.0
    %1312 = vmatmul.mubr.f32.gmra.mrb[0].mxu0 %v1158
    %v1313 = vpop.f32.mrb[0].mxu0
    %v1314 = vadd.f32 0.5, %v1313
    %v1315 = vpop.f32.mrb[0].mxu0
    %v1316 = vadd.f32 0.5, %v1315
    %1317 = vmatprep.mubr.f32.mxu0 0.0
    %1318 = vmatmul.mubr.f32.gmra.mrb[0].mxu0 %v1161
    %v1319 = vpop.f32.mrb[0].mxu0
    %v1320 = vadd.f32 0.5, %v1319
    %v1321 = vpop.f32.mrb[0].mxu0
    %v1322 = vadd.f32 0.5, %v1321
    %1323 = vmatprep.mubr.f32.mxu0 0.0
    %1324 = vmatmul.mubr.f32.gmra.mrb[0].mxu0 %v1164
    %v1325 = vpop.f32.mrb[0].mxu0
    %v1326 = vadd.f32 0.5, %v1325
    %v1327 = vpop.f32.mrb[0].mxu0
    %v1328 = vadd.f32 0.5, %v1327
    %1329 = vmatprep.mubr.f32.mxu0 0.0
    %1330 = vmatmul.mubr.f32.gmra.mrb[0].mxu0 %v1167
    %v1331 = vpop.f32.mrb[0].mxu0
    %v1332 = vadd.f32 0.5, %v1331
    %v1333 = vpop.f32.mrb[0].mxu0
    %v1334 = vadd.f32 0.5, %v1333
    %1335 = vmatprep.mubr.f32.mxu0 0.0
    %1336 = vmatmul.mubr.f32.gmra.mrb[0].mxu0 %v1170
    %v1337 = vpop.f32.mrb[0].mxu0
    %v1338 = vadd.f32 0.5, %v1337
    %v1339 = vpop.f32.mrb[0].mxu0
    %v1340 = vadd.f32 0.5, %v1339
    %1341 = vmatprep.mubr.f32.mxu0 0.0
    %1342 = vmatmul.mubr.f32.gmra.mrb[0].mxu0 %v1173
    %v1343 = vpop.f32.mrb[0].mxu0
    %v1344 = vadd.f32 0.5, %v1343
    %v1345 = vpop.f32.mrb[0].mxu0
    %v1346 = vadd.f32 0.5, %v1345
    %1347 = vmatprep.mubr.f32.mxu0 0.0
    %1348 = vmatmul.mubr.f32.gmra.mrb[0].mxu0 %v1176
    %v1349 = vpop.f32.mrb[0].mxu0
    %v1350 = vadd.f32 0.5, %v1349
    %v1351 = vpop.f32.mrb[0].mxu0
    %v1352 = vadd.f32 0.5, %v1351
    %1353 = vmatprep.mubr.f32.mxu0 0.0
    %1354 = vmatmul.mubr.f32.gmra.mrb[0].mxu0 %v1179
    %v1355 = vpop.f32.mrb[0].mxu0
    %v1356 = vadd.f32 0.5, %v1355
    %v1357 = vpop.f32.mrb[0].mxu0
    %v1358 = vadd.f32 0.5, %v1357
    %1359 = vmatprep.mubr.f32.mxu0 0.0
    %1360 = vmatmul.mubr.f32.gmra.mrb[0].mxu0 %v1182
    %v1361 = vpop.f32.mrb[0].mxu0
    %v1362 = vadd.f32 0.5, %v1361
    %v1363 = vpop.f32.mrb[0].mxu0
    %v1364 = vadd.f32 0.5, %v1363
    %1365 = vmatprep.mubr.f32.mxu0 0.0
    %1366 = vmatmul.mubr.f32.gmra.mrb[0].mxu0 %v1185
    %v1367 = vpop.f32.mrb[0].mxu0
    %v1368 = vadd.f32 0.5, %v1367
    %v1369 = vpop.f32.mrb[0].mxu0
    %v1370 = vadd.f32 0.5, %v1369
    %1371 = vmatprep.mubr.f32.mxu0 0.0
    %1372 = vmatmul.mubr.f32.gmra.mrb[0].mxu0 %v1188
    %v1373 = vpop.f32.mrb[0].mxu0
    %v1374 = vadd.f32 0.5, %v1373
    %v1375 = vpop.f32.mrb[0].mxu0
    %v1376 = vadd.f32 0.5, %v1375
    %1377 = vmatprep.mubr.f32.mxu0 0.0
    %1378 = vmatmul.mubr.f32.gmra.mrb[0].mxu0 %v1191
    %v1379 = vpop.f32.mrb[0].mxu0
    %v1380 = vadd.f32 0.5, %v1379
    %v1381 = vpop.f32.mrb[0].mxu0
    %v1382 = vadd.f32 0.5, %v1381
    %1383 = vmatprep.mubr.f32.mxu0 0.0
    %1384 = vmatmul.mubr.f32.gmra.mrb[0].mxu0 %v1194
    %v1385 = vpop.f32.mrb[0].mxu0
    %v1386 = vadd.f32 0.5, %v1385
    %v1387 = vpop.f32.mrb[0].mxu0
    %v1388 = vadd.f32 0.5, %v1387
    %1389 = vmatprep.mubr.f32.mxu0 0.0
    %1390 = vmatmul.mubr.f32.gmra.mrb[0].mxu0 %v1197
    %v1391 = vpop.f32.mrb[0].mxu0
    %v1392 = vadd.f32 0.5, %v1391
    %v1393 = vpop.f32.mrb[0].mxu0
    %v1394 = vadd.f32 0.5, %v1393
    %1395 = vmatprep.mubr.f32.mxu0 0.0
    %1396 = vmatmul.mubr.f32.gmra.mrb[0].mxu0 %v1200
    %v1397 = vpop.f32.mrb[0].mxu0
    %v1398 = vadd.f32 0.5, %v1397
    %v1399 = vpop.f32.mrb[0].mxu0
    %v1400 = vadd.f32 0.5, %v1399
    %1401 = vmatprep.mubr.f32.mxu0 0.0
    %1402 = vmatmul.mubr.f32.gmra.mrb[0].mxu0 %v1203
    %v1403 = vpop.f32.mrb[0].mxu0
    %v1404 = vadd.f32 0.5, %v1403
    %v1405 = vpop.f32.mrb[0].mxu0
    %v1406 = vadd.f32 0.5, %v1405
    %1407 = vmatprep.mubr.f32.mxu0 0.0
    %1408 = vmatmul.mubr.f32.gmra.mrb[0].mxu0 %v1206
    %v1409 = vpop.f32.mrb[0].mxu0
    %v1410 = vadd.f32 0.5, %v1409
    %v1411 = vpop.f32.mrb[0].mxu0
    %v1412 = vadd.f32 0.5, %v1411
    %1413 = vmatprep.mubr.f32.mxu0 0.0
    %1414 = vmatmul.mubr.f32.gmra.mrb[0].mxu0 %v1209
    %v1415 = vpop.f32.mrb[0].mxu0
    %v1416 = vadd.f32 0.5, %v1415
    %v1417 = vpop.f32.mrb[0].mxu0
    %v1418 = vadd.f32 0.5, %v1417
    %1419 = vmatprep.mubr.f32.mxu0 0.0
    %1420 = vmatmul.mubr.f32.gmra.mrb[0].mxu0 %v1212
    %v1421 = vpop.f32.mrb[0].mxu0
    %v1422 = vadd.f32 0.5, %v1421
    %v1423 = vpop.f32.mrb[0].mxu0
    %v1424 = vadd.f32 0.5, %v1423
    %1425 = vmatprep.mubr.f32.mxu0 0.0
    %1426 = vmatmul.mubr.f32.gmra.mrb[0].mxu0 %v1215
    %v1427 = vpop.f32.mrb[0].mxu0
    %v1428 = vadd.f32 0.5, %v1427
    %v1429 = vpop.f32.mrb[0].mxu0
    %v1430 = vadd.f32 0.5, %v1429
    %1431 = vmatprep.mubr.f32.mxu0 0.0
    %1432 = vmatmul.mubr.f32.gmra.mrb[0].mxu0 %v1218
    %v1433 = vpop.f32.mrb[0].mxu0
    %v1434 = vadd.f32 0.5, %v1433
    %v1435 = vpop.f32.mrb[0].mxu0
    %v1436 = vadd.f32 0.5, %v1435
    %1437 = vmatprep.mubr.f32.mxu0 0.0
    %1438 = vmatmul.mubr.f32.gmra.mrb[0].mxu0 %v1221
    %v1439 = vpop.f32.mrb[0].mxu0
    %v1440 = vadd.f32 0.5, %v1439
    %v1441 = vpop.f32.mrb[0].mxu0
    %v1442 = vadd.f32 0.5, %v1441
    %1443 = vmatprep.mubr.f32.mxu0 0.0
    %1444 = vmatmul.mubr.f32.gmra.mrb[0].mxu0 %v1224
    %v1445 = vpop.f32.mrb[0].mxu0
    %v1446 = vadd.f32 0.5, %v1445
    %v1447 = vpop.f32.mrb[0].mxu0
    %v1448 = vadd.f32 0.5, %v1447
    %1449 = vmatprep.mubr.f32.mxu0 0.0
    %1450 = vmatmul.mubr.f32.gmra.mrb[0].mxu0 %v1227
    %v1451 = vpop.f32.mrb[0].mxu0
    %v1452 = vadd.f32 0.5, %v1451
    %v1453 = vpop.f32.mrb[0].mxu0
    %v1454 = vadd.f32 0.5, %v1453
    %1455 = vmatprep.mubr.f32.mxu0 0.0
    %1456 = vmatmul.mubr.f32.gmra.mrb[0].mxu0 %v1230
    %v1457 = vpop.f32.mrb[0].mxu0
    %v1458 = vadd.f32 0.5, %v1457
    %v1459 = vpop.f32.mrb[0].mxu0
    %v1460 = vadd.f32 0.5, %v1459
    %1461 = vmatprep.mubr.f32.mxu0 0.0
    %1462 = vmatmul.mubr.f32.gmra.mrb[0].mxu0 %v1233
    %v1463 = vpop.f32.mrb[0].mxu0
    %v1464 = vadd.f32 0.5, %v1463
    %v1465 = vpop.f32.mrb[0].mxu0
    %v1466 = vadd.f32 0.5, %v1465
    %1467 = vdwg.mxu0
    %v1468 = vfloor.f32 %v1302
    %v1469 = vfloor.f32 %v1304
    %v1470 = vfloor.f32 %v1308
    %v1471 = vfloor.f32 %v1310
    %v1472 = vfloor.f32 %v1314
    %v1473 = vfloor.f32 %v1316
    %v1474 = vfloor.f32 %v1320
    %v1475 = vfloor.f32 %v1322
    %v1476 = vfloor.f32 %v1326
    %v1477 = vfloor.f32 %v1328
    %v1478 = vfloor.f32 %v1332
    %v1479 = vfloor.f32 %v1334
    %v1480 = vfloor.f32 %v1338
    %v1481 = vfloor.f32 %v1340
    %v1482 = vfloor.f32 %v1344
    %v1483 = vfloor.f32 %v1346
    %v1484 = vfloor.f32 %v1350
    %v1485 = vfloor.f32 %v1352
    %v1486 = vfloor.f32 %v1356
    %v1487 = vfloor.f32 %v1358
    %v1488 = vfloor.f32 %v1362
    %v1489 = vfloor.f32 %v1364
    %v1490 = vfloor.f32 %v1368
    %v1491 = vfloor.f32 %v1370
    %v1492 = vfloor.f32 %v1374
    %v1493 = vfloor.f32 %v1376
    %v1494 = vfloor.f32 %v1380
    %v1495 = vfloor.f32 %v1382
    %v1496 = vfloor.f32 %v1386
    %v1497 = vfloor.f32 %v1388
    %v1498 = vfloor.f32 %v1392
    %v1499 = vfloor.f32 %v1394
    %v1500 = vfloor.f32 %v1398
    %v1501 = vfloor.f32 %v1400
    %v1502 = vfloor.f32 %v1404
    %v1503 = vfloor.f32 %v1406
    %v1504 = vfloor.f32 %v1410
    %v1505 = vfloor.f32 %v1412
    %v1506 = vfloor.f32 %v1416
    %v1507 = vfloor.f32 %v1418
    %v1508 = vfloor.f32 %v1422
    %v1509 = vfloor.f32 %v1424
    %v1510 = vfloor.f32 %v1428
    %v1511 = vfloor.f32 %v1430
    %v1512 = vfloor.f32 %v1434
    %v1513 = vfloor.f32 %v1436
    %v1514 = vfloor.f32 %v1440
    %v1515 = vfloor.f32 %v1442
    %v1516 = vfloor.f32 %v1446
    %v1517 = vfloor.f32 %v1448
    %v1518 = vfloor.f32 %v1452
    %v1519 = vfloor.f32 %v1454
    %v1520 = vfloor.f32 %v1458
    %v1521 = vfloor.f32 %v1460
    %v1522 = vfloor.f32 %v1464
    %v1523 = vfloor.f32 %v1466
    %v1524 = vmax.f32 %v1468, 0.0
    %v1525 = vmax.f32 %v1469, 0.0
    %v1526 = vmax.f32 %v1470, 0.0
    %v1527 = vmax.f32 %v1471, 0.0
    %v1528 = vmax.f32 %v1472, 0.0
    %v1529 = vmax.f32 %v1473, 0.0
    %v1530 = vmax.f32 %v1474, 0.0
    %v1531 = vmax.f32 %v1475, 0.0
    %v1532 = vmax.f32 %v1476, 0.0
    %v1533 = vmax.f32 %v1477, 0.0
    %v1534 = vmax.f32 %v1478, 0.0
    %v1535 = vmax.f32 %v1479, 0.0
    %v1536 = vmax.f32 %v1480, 0.0
    %v1537 = vmax.f32 %v1481, 0.0
    %v1538 = vmax.f32 %v1482, 0.0
    %v1539 = vmax.f32 %v1483, 0.0
    %v1540 = vmax.f32 %v1484, 0.0
    %v1541 = vmax.f32 %v1485, 0.0
    %v1542 = vmax.f32 %v1486, 0.0
    %v1543 = vmax.f32 %v1487, 0.0
    %v1544 = vmax.f32 %v1488, 0.0
    %v1545 = vmax.f32 %v1489, 0.0
    %v1546 = vmax.f32 %v1490, 0.0
    %v1547 = vmax.f32 %v1491, 0.0
    %v1548 = vmax.f32 %v1492, 0.0
    %v1549 = vmax.f32 %v1493, 0.0
    %v1550 = vmax.f32 %v1494, 0.0
    %v1551 = vmax.f32 %v1495, 0.0
    %v1552 = vmax.f32 %v1496, 0.0
    %v1553 = vmax.f32 %v1497, 0.0
    %v1554 = vmax.f32 %v1498, 0.0
    %v1555 = vmax.f32 %v1499, 0.0
    %v1556 = vmax.f32 %v1500, 0.0
    %v1557 = vmax.f32 %v1501, 0.0
    %v1558 = vmax.f32 %v1502, 0.0
    %v1559 = vmax.f32 %v1503, 0.0
    %v1560 = vmax.f32 %v1504, 0.0
    %v1561 = vmax.f32 %v1505, 0.0
    %v1562 = vmax.f32 %v1506, 0.0
    %v1563 = vmax.f32 %v1507, 0.0
    %v1564 = vmax.f32 %v1508, 0.0
    %v1565 = vmax.f32 %v1509, 0.0
    %v1566 = vmax.f32 %v1510, 0.0
    %v1567 = vmax.f32 %v1511, 0.0
    %v1568 = vmax.f32 %v1512, 0.0
    %v1569 = vmax.f32 %v1513, 0.0
    %v1570 = vmax.f32 %v1514, 0.0
    %v1571 = vmax.f32 %v1515, 0.0
    %v1572 = vmax.f32 %v1516, 0.0
    %v1573 = vmax.f32 %v1517, 0.0
    %v1574 = vmax.f32 %v1518, 0.0
    %v1575 = vmax.f32 %v1519, 0.0
    %v1576 = vmax.f32 %v1520, 0.0
    %v1577 = vmax.f32 %v1521, 0.0
    %v1578 = vmax.f32 %v1522, 0.0
    %v1579 = vmax.f32 %v1523, 0.0
    %v1580 = vmin.f32 %v1524, 255.0
    %v1581 = vmin.f32 %v1525, 255.0
    %v1582 = vmin.f32 %v1526, 255.0
    %v1583 = vmin.f32 %v1527, 255.0
    %v1584 = vmin.f32 %v1528, 255.0
    %v1585 = vmin.f32 %v1529, 255.0
    %v1586 = vmin.f32 %v1530, 255.0
    %v1587 = vmin.f32 %v1531, 255.0
    %v1588 = vmin.f32 %v1532, 255.0
    %v1589 = vmin.f32 %v1533, 255.0
    %v1590 = vmin.f32 %v1534, 255.0
    %v1591 = vmin.f32 %v1535, 255.0
    %v1592 = vmin.f32 %v1536, 255.0
    %v1593 = vmin.f32 %v1537, 255.0
    %v1594 = vmin.f32 %v1538, 255.0
    %v1595 = vmin.f32 %v1539, 255.0
    %v1596 = vmin.f32 %v1540, 255.0
    %v1597 = vmin.f32 %v1541, 255.0
    %v1598 = vmin.f32 %v1542, 255.0
    %v1599 = vmin.f32 %v1543, 255.0
    %v1600 = vmin.f32 %v1544, 255.0
    %v1601 = vmin.f32 %v1545, 255.0
    %v1602 = vmin.f32 %v1546, 255.0
    %v1603 = vmin.f32 %v1547, 255.0
    %v1604 = vmin.f32 %v1548, 255.0
    %v1605 = vmin.f32 %v1549, 255.0
    %v1606 = vmin.f32 %v1550, 255.0
    %v1607 = vmin.f32 %v1551, 255.0
    %v1608 = vmin.f32 %v1552, 255.0
    %v1609 = vmin.f32 %v1553, 255.0
    %v1610 = vmin.f32 %v1554, 255.0
    %v1611 = vmin.f32 %v1555, 255.0
    %v1612 = vmin.f32 %v1556, 255.0
    %v1613 = vmin.f32 %v1557, 255.0
    %v1614 = vmin.f32 %v1558, 255.0
    %v1615 = vmin.f32 %v1559, 255.0
    %v1616 = vmin.f32 %v1560, 255.0
    %v1617 = vmin.f32 %v1561, 255.0
    %v1618 = vmin.f32 %v1562, 255.0
    %v1619 = vmin.f32 %v1563, 255.0
    %v1620 = vmin.f32 %v1564, 255.0
    %v1621 = vmin.f32 %v1565, 255.0
    %v1622 = vmin.f32 %v1566, 255.0
    %v1623 = vmin.f32 %v1567, 255.0
    %v1624 = vmin.f32 %v1568, 255.0
    %v1625 = vmin.f32 %v1569, 255.0
    %v1626 = vmin.f32 %v1570, 255.0
    %v1627 = vmin.f32 %v1571, 255.0
    %v1628 = vmin.f32 %v1572, 255.0
    %v1629 = vmin.f32 %v1573, 255.0
    %v1630 = vmin.f32 %v1574, 255.0
    %v1631 = vmin.f32 %v1575, 255.0
    %v1632 = vmin.f32 %v1576, 255.0
    %v1633 = vmin.f32 %v1577, 255.0
    %v1634 = vmin.f32 %v1578, 255.0
    %v1635 = vmin.f32 %v1579, 255.0
    %v1636 = vmul.f32 %v1580, 0.007843138
    %v1637 = vmul.f32 %v1581, 0.007843138
    %v1638 = vmul.f32 %v1582, 0.007843138
    %v1639 = vmul.f32 %v1583, 0.007843138
    %v1640 = vmul.f32 %v1584, 0.007843138
    %v1641 = vmul.f32 %v1585, 0.007843138
    %v1642 = vmul.f32 %v1586, 0.007843138
    %v1643 = vmul.f32 %v1587, 0.007843138
    %v1644 = vmul.f32 %v1588, 0.007843138
    %v1645 = vmul.f32 %v1589, 0.007843138
    %v1646 = vmul.f32 %v1590, 0.007843138
    %v1647 = vmul.f32 %v1591, 0.007843138
    %v1648 = vmul.f32 %v1592, 0.007843138
    %v1649 = vmul.f32 %v1593, 0.007843138
    %v1650 = vmul.f32 %v1594, 0.007843138
    %v1651 = vmul.f32 %v1595, 0.007843138
    %v1652 = vmul.f32 %v1596, 0.007843138
    %v1653 = vmul.f32 %v1597, 0.007843138
    %v1654 = vmul.f32 %v1598, 0.007843138
    %v1655 = vmul.f32 %v1599, 0.007843138
    %v1656 = vmul.f32 %v1600, 0.007843138
    %v1657 = vmul.f32 %v1601, 0.007843138
    %v1658 = vmul.f32 %v1602, 0.007843138
    %v1659 = vmul.f32 %v1603, 0.007843138
    %v1660 = vmul.f32 %v1604, 0.007843138
    %v1661 = vmul.f32 %v1605, 0.007843138
    %v1662 = vmul.f32 %v1606, 0.007843138
    %v1663 = vmul.f32 %v1607, 0.007843138
    %v1664 = vmul.f32 %v1608, 0.007843138
    %v1665 = vmul.f32 %v1609, 0.007843138
    %v1666 = vmul.f32 %v1610, 0.007843138
    %v1667 = vmul.f32 %v1611, 0.007843138
    %v1668 = vmul.f32 %v1612, 0.007843138
    %v1669 = vmul.f32 %v1613, 0.007843138
    %v1670 = vmul.f32 %v1614, 0.007843138
    %v1671 = vmul.f32 %v1615, 0.007843138
    %v1672 = vmul.f32 %v1616, 0.007843138
    %v1673 = vmul.f32 %v1617, 0.007843138
    %v1674 = vmul.f32 %v1618, 0.007843138
    %v1675 = vmul.f32 %v1619, 0.007843138
    %v1676 = vmul.f32 %v1620, 0.007843138
    %v1677 = vmul.f32 %v1621, 0.007843138
    %v1678 = vmul.f32 %v1622, 0.007843138
    %v1679 = vmul.f32 %v1623, 0.007843138
    %v1680 = vmul.f32 %v1624, 0.007843138
    %v1681 = vmul.f32 %v1625, 0.007843138
    %v1682 = vmul.f32 %v1626, 0.007843138
    %v1683 = vmul.f32 %v1627, 0.007843138
    %v1684 = vmul.f32 %v1628, 0.007843138
    %v1685 = vmul.f32 %v1629, 0.007843138
    %v1686 = vmul.f32 %v1630, 0.007843138
    %v1687 = vmul.f32 %v1631, 0.007843138
    %v1688 = vmul.f32 %v1632, 0.007843138
    %v1689 = vmul.f32 %v1633, 0.007843138
    %v1690 = vmul.f32 %v1634, 0.007843138
    %v1691 = vmul.f32 %v1635, 0.007843138
    %v1692 = vsub.f32 %v1636, 1.0
    %v1693 = vsub.f32 %v1637, 1.0
    %v1694 = vsub.f32 %v1638, 1.0
    %v1695 = vsub.f32 %v1639, 1.0
    %v1696 = vsub.f32 %v1640, 1.0
    %v1697 = vsub.f32 %v1641, 1.0
    %v1698 = vsub.f32 %v1642, 1.0
    %v1699 = vsub.f32 %v1643, 1.0
    %v1700 = vsub.f32 %v1644, 1.0
    %v1701 = vsub.f32 %v1645, 1.0
    %v1702 = vsub.f32 %v1646, 1.0
    %v1703 = vsub.f32 %v1647, 1.0
    %v1704 = vsub.f32 %v1648, 1.0
    %v1705 = vsub.f32 %v1649, 1.0
    %v1706 = vsub.f32 %v1650, 1.0
    %v1707 = vsub.f32 %v1651, 1.0
    %v1708 = vsub.f32 %v1652, 1.0
    %v1709 = vsub.f32 %v1653, 1.0
    %v1710 = vsub.f32 %v1654, 1.0
    %v1711 = vsub.f32 %v1655, 1.0
    %v1712 = vsub.f32 %v1656, 1.0
    %v1713 = vsub.f32 %v1657, 1.0
    %v1714 = vsub.f32 %v1658, 1.0
    %v1715 = vsub.f32 %v1659, 1.0
    %v1716 = vsub.f32 %v1660, 1.0
    %v1717 = vsub.f32 %v1661, 1.0
    %v1718 = vsub.f32 %v1662, 1.0
    %v1719 = vsub.f32 %v1663, 1.0
    %v1720 = vsub.f32 %v1664, 1.0
    %v1721 = vsub.f32 %v1665, 1.0
    %v1722 = vsub.f32 %v1666, 1.0
    %v1723 = vsub.f32 %v1667, 1.0
    %v1724 = vsub.f32 %v1668, 1.0
    %v1725 = vsub.f32 %v1669, 1.0
    %v1726 = vsub.f32 %v1670, 1.0
    %v1727 = vsub.f32 %v1671, 1.0
    %v1728 = vsub.f32 %v1672, 1.0
    %v1729 = vsub.f32 %v1673, 1.0
    %v1730 = vsub.f32 %v1674, 1.0
    %v1731 = vsub.f32 %v1675, 1.0
    %v1732 = vsub.f32 %v1676, 1.0
    %v1733 = vsub.f32 %v1677, 1.0
    %v1734 = vsub.f32 %v1678, 1.0
    %v1735 = vsub.f32 %v1679, 1.0
    %v1736 = vsub.f32 %v1680, 1.0
    %v1737 = vsub.f32 %v1681, 1.0
    %v1738 = vsub.f32 %v1682, 1.0
    %v1739 = vsub.f32 %v1683, 1.0
    %v1740 = vsub.f32 %v1684, 1.0
    %v1741 = vsub.f32 %v1685, 1.0
    %v1742 = vsub.f32 %v1686, 1.0
    %v1743 = vsub.f32 %v1687, 1.0
    %v1744 = vsub.f32 %v1688, 1.0
    %v1745 = vsub.f32 %v1689, 1.0
    %v1746 = vsub.f32 %v1690, 1.0
    %v1747 = vsub.f32 %v1691, 1.0
    %s1748 = scalar_lea.vmem [#allocation2], 448
    %1749 = vst [vmem:[%s1748] sm:$0xff] %v1692
    %1750 = vst.msk [vmem:[%s1748 + $0x8] sm:$0xff] %vm934, %v1693
    %1751 = vst [vmem:[%s1748 + $0x10] sm:$0xff] %v1694
    %1752 = vst.msk [vmem:[%s1748 + $0x18] sm:$0xff] %vm934, %v1695
    %1753 = vst [vmem:[%s1748 + $0x20] sm:$0xff] %v1696
    %1754 = vst.msk [vmem:[%s1748 + $0x28] sm:$0xff] %vm934, %v1697
    %1755 = vst [vmem:[%s1748 + $0x30] sm:$0xff] %v1698
    %1756 = vst.msk [vmem:[%s1748 + $0x38] sm:$0xff] %vm934, %v1699
    %1757 = vst [vmem:[%s1748 + $0x40] sm:$0xff] %v1700
    %1758 = vst.msk [vmem:[%s1748 + $0x48] sm:$0xff] %vm934, %v1701
    %1759 = vst [vmem:[%s1748 + $0x50] sm:$0xff] %v1702
    %1760 = vst.msk [vmem:[%s1748 + $0x58] sm:$0xff] %vm934, %v1703
    %1761 = vst [vmem:[%s1748 + $0x60] sm:$0xff] %v1704
    %1762 = vst.msk [vmem:[%s1748 + $0x68] sm:$0xff] %vm934, %v1705
    %1763 = vst [vmem:[%s1748 + $0x70] sm:$0xff] %v1706
    %1764 = vst.msk [vmem:[%s1748 + $0x78] sm:$0xff] %vm934, %v1707
    %1765 = vst [vmem:[%s1748 + $0x80] sm:$0xff] %v1708
    %1766 = vst.msk [vmem:[%s1748 + $0x88] sm:$0xff] %vm934, %v1709
    %1767 = vst [vmem:[%s1748 + $0x90] sm:$0xff] %v1710
    %1768 = vst.msk [vmem:[%s1748 + $0x98] sm:$0xff] %vm934, %v1711
    %1769 = vst [vmem:[%s1748 + $0xa0] sm:$0xff] %v1712
    %1770 = vst.msk [vmem:[%s1748 + $0xa8] sm:$0xff] %vm934, %v1713
    %1771 = vst [vmem:[%s1748 + $0xb0] sm:$0xff] %v1714
    %1772 = vst.msk [vmem:[%s1748 + $0xb8] sm:$0xff] %vm934, %v1715
    %1773 = vst [vmem:[%s1748 + $0xc0] sm:$0xff] %v1716
    %1774 = vst.msk [vmem:[%s1748 + $0xc8] sm:$0xff] %vm934, %v1717
    %1775 = vst [vmem:[%s1748 + $0xd0] sm:$0xff] %v1718
    %1776 = vst.msk [vmem:[%s1748 + $0xd8] sm:$0xff] %vm934, %v1719
    %1777 = vst [vmem:[%s1748 + $0xe0] sm:$0xff] %v1720
    %1778 = vst.msk [vmem:[%s1748 + $0xe8] sm:$0xff] %vm934, %v1721
    %1779 = vst [vmem:[%s1748 + $0xf0] sm:$0xff] %v1722
    %1780 = vst.msk [vmem:[%s1748 + $0xf8] sm:$0xff] %vm934, %v1723
    %1781 = vst [vmem:[%s1748 + $0x100] sm:$0xff] %v1724
    %1782 = vst.msk [vmem:[%s1748 + $0x108] sm:$0xff] %vm934, %v1725
    %1783 = vst [vmem:[%s1748 + $0x110] sm:$0xff] %v1726
    %1784 = vst.msk [vmem:[%s1748 + $0x118] sm:$0xff] %vm934, %v1727
    %1785 = vst [vmem:[%s1748 + $0x120] sm:$0xff] %v1728
    %1786 = vst.msk [vmem:[%s1748 + $0x128] sm:$0xff] %vm934, %v1729
    %1787 = vst [vmem:[%s1748 + $0x130] sm:$0xff] %v1730
    %1788 = vst.msk [vmem:[%s1748 + $0x138] sm:$0xff] %vm934, %v1731
    %1789 = vst [vmem:[%s1748 + $0x140] sm:$0xff] %v1732
    %1790 = vst.msk [vmem:[%s1748 + $0x148] sm:$0xff] %vm934, %v1733
    %1791 = vst [vmem:[%s1748 + $0x150] sm:$0xff] %v1734
    %1792 = vst.msk [vmem:[%s1748 + $0x158] sm:$0xff] %vm934, %v1735
    %1793 = vst [vmem:[%s1748 + $0x160] sm:$0xff] %v1736
    %1794 = vst.msk [vmem:[%s1748 + $0x168] sm:$0xff] %vm934, %v1737
    %1795 = vst [vmem:[%s1748 + $0x170] sm:$0xff] %v1738
    %1796 = vst.msk [vmem:[%s1748 + $0x178] sm:$0xff] %vm934, %v1739
    %1797 = vst [vmem:[%s1748 + $0x180] sm:$0xff] %v1740
    %1798 = vst.msk [vmem:[%s1748 + $0x188] sm:$0xff] %vm934, %v1741
    %1799 = vst [vmem:[%s1748 + $0x190] sm:$0xff] %v1742
    %1800 = vst.msk [vmem:[%s1748 + $0x198] sm:$0xff] %vm934, %v1743
    %1801 = vst [vmem:[%s1748 + $0x1a0] sm:$0xff] %v1744
    %1802 = vst.msk [vmem:[%s1748 + $0x1a8] sm:$0xff] %vm934, %v1745
    %1803 = vst [vmem:[%s1748 + $0x1b0] sm:$0xff] %v1746
    %1804 = vst.msk [vmem:[%s1748 + $0x1b8] sm:$0xff] %vm934, %v1747
    %s1805 = scalar_lea.vmem %s0, 8
    %v1806 = vld [vmem:[%s1805] sm:$0x3]
    %v1807 = vld [vmem:[%s1805 + $0x2] sm:$0x3]
    %v1808 = vunpack.c.0.s8 %v1806
    %v1809 = vunpack.c.0.s8 %v1807
    %v1810 = vand.u32 %v1808, 255
    %v1811 = vand.u32 %v1809, 255
    %v1812 = vcvt.s32.f32 %v1810
    %v1813 = vcvt.s32.f32 %v1811
    %v1814 = vmul.f32 %v1812, %v53
    %v1815 = vmul.f32 %v1813, %v54
    %v1816 = vadd.f32 %v1814, %v57
    %v1817 = vadd.f32 %v1815, %v58
    %v1818 = vfloor.f32 %v1816
    %v1819 = vfloor.f32 %v1817
    %v1820 = vpack.c.bf16 %v1819, %v1818
    %1821 = vmatprep.subr.bf16.mxu0 0
    %1822 = vmatpush1.bf16.msra.mxu0 %v1820
    %1823 = vmatprep.subr.bf16.mxu0 0
    %1824 = vmatpush1.bf16.msra.mxu0 0
    %1825 = vmatprep.subr.bf16.mxu0 0
    %1826 = vmatpush1.bf16.msra.mxu0 0
    %1827 = vmatprep.subr.bf16.mxu0 0
    %1828 = vmatpush1.bf16.msra.mxu0 0
    %1829 = vmatprep.subr.bf16.mxu0 0
    %1830 = vmatpush1.bf16.msra.mxu0 0
    %1831 = vmatprep.subr.bf16.mxu0 0
    %1832 = vmatpush1.bf16.msra.mxu0 0
    %1833 = vmatprep.subr.bf16.mxu0 0
    %1834 = vmatpush1.bf16.msra.mxu0 0
    %1835 = vmatprep.subr.bf16.mxu0 0
    %1836 = vmatpush1.bf16.msra.mxu0 0
    %1837 = vmatprep.subr.bf16.mxu0 0
    %1838 = vmatpush1.bf16.msra.mxu0 0
    %1839 = vmatprep.subr.bf16.mxu0 0
    %1840 = vmatpush1.bf16.msra.mxu0 0
    %1841 = vmatprep.subr.bf16.mxu0 0
    %1842 = vmatpush1.bf16.msra.mxu0 0
    %1843 = vmatprep.subr.bf16.mxu0 0
    %1844 = vmatpush1.bf16.msra.mxu0 0
    %1845 = vmatprep.subr.bf16.mxu0 0
    %1846 = vmatpush1.bf16.msra.mxu0 0
    %1847 = vmatprep.subr.bf16.mxu0 0
    %1848 = vmatpush1.bf16.msra.mxu0 0
    %1849 = vmatprep.subr.bf16.mxu0 0
    %1850 = vmatpush1.bf16.msra.mxu0 0
    %1851 = vmatprep.subr.bf16.mxu0 0
    %1852 = vmatpush1.bf16.msra.mxu0 0
    %1853 = vmatprep.mubr.bf16.mxu0 0
    %1854 = vmatmul.mubr.bf16.gmra.mrb[0].mxu0 %v150
    %v1855 = vpop.f32.mrb[0].mxu0
    %v1856 = vadd.f32 0.0, %v1855
    %v1857 = vpop.f32.mrb[0].mxu0
    %v1858 = vpop.f32.mrb[0].mxu0
    %v1859 = vadd.f32 0.0, %v1858
    %v1860 = vpop.f32.mrb[0].mxu0
    %1861 = vmatprep.mubr.bf16.mxu0 0
    %1862 = vmatmul.mubr.bf16.gmra.mrb[0].mxu0 %v153
    %v1863 = vpop.f32.mrb[0].mxu0
    %v1864 = vadd.f32 0.0, %v1863
    %v1865 = vpop.f32.mrb[0].mxu0
    %v1866 = vpop.f32.mrb[0].mxu0
    %v1867 = vadd.f32 0.0, %v1866
    %v1868 = vpop.f32.mrb[0].mxu0
    %1869 = vmatprep.mubr.bf16.mxu0 0
    %1870 = vmatmul.mubr.bf16.gmra.mrb[0].mxu0 %v156
    %v1871 = vpop.f32.mrb[0].mxu0
    %v1872 = vadd.f32 0.0, %v1871
    %v1873 = vpop.f32.mrb[0].mxu0
    %v1874 = vpop.f32.mrb[0].mxu0
    %v1875 = vadd.f32 0.0, %v1874
    %v1876 = vpop.f32.mrb[0].mxu0
    %1877 = vmatprep.mubr.bf16.mxu0 0
    %1878 = vmatmul.mubr.bf16.gmra.mrb[0].mxu0 %v159
    %v1879 = vpop.f32.mrb[0].mxu0
    %v1880 = vadd.f32 0.0, %v1879
    %v1881 = vpop.f32.mrb[0].mxu0
    %v1882 = vpop.f32.mrb[0].mxu0
    %v1883 = vadd.f32 0.0, %v1882
    %v1884 = vpop.f32.mrb[0].mxu0
    %1885 = vmatprep.mubr.bf16.mxu0 0
    %1886 = vmatmul.mubr.bf16.gmra.mrb[0].mxu0 %v162
    %v1887 = vpop.f32.mrb[0].mxu0
    %v1888 = vadd.f32 0.0, %v1887
    %v1889 = vpop.f32.mrb[0].mxu0
    %v1890 = vpop.f32.mrb[0].mxu0
    %v1891 = vadd.f32 0.0, %v1890
    %v1892 = vpop.f32.mrb[0].mxu0
    %1893 = vmatprep.mubr.bf16.mxu0 0
    %1894 = vmatmul.mubr.bf16.gmra.mrb[0].mxu0 %v165
    %v1895 = vpop.f32.mrb[0].mxu0
    %v1896 = vadd.f32 0.0, %v1895
    %v1897 = vpop.f32.mrb[0].mxu0
    %v1898 = vpop.f32.mrb[0].mxu0
    %v1899 = vadd.f32 0.0, %v1898
    %v1900 = vpop.f32.mrb[0].mxu0
    %1901 = vmatprep.mubr.bf16.mxu0 0
    %1902 = vmatmul.mubr.bf16.gmra.mrb[0].mxu0 %v168
    %v1903 = vpop.f32.mrb[0].mxu0
    %v1904 = vadd.f32 0.0, %v1903
    %v1905 = vpop.f32.mrb[0].mxu0
    %v1906 = vpop.f32.mrb[0].mxu0
    %v1907 = vadd.f32 0.0, %v1906
    %v1908 = vpop.f32.mrb[0].mxu0
    %1909 = vmatprep.mubr.bf16.mxu0 0
    %1910 = vmatmul.mubr.bf16.gmra.mrb[0].mxu0 %v171
    %v1911 = vpop.f32.mrb[0].mxu0
    %v1912 = vadd.f32 0.0, %v1911
    %v1913 = vpop.f32.mrb[0].mxu0
    %v1914 = vpop.f32.mrb[0].mxu0
    %v1915 = vadd.f32 0.0, %v1914
    %v1916 = vpop.f32.mrb[0].mxu0
    %1917 = vmatprep.mubr.bf16.mxu0 0
    %1918 = vmatmul.mubr.bf16.gmra.mrb[0].mxu0 %v174
    %v1919 = vpop.f32.mrb[0].mxu0
    %v1920 = vadd.f32 0.0, %v1919
    %v1921 = vpop.f32.mrb[0].mxu0
    %v1922 = vpop.f32.mrb[0].mxu0
    %v1923 = vadd.f32 0.0, %v1922
    %v1924 = vpop.f32.mrb[0].mxu0
    %1925 = vmatprep.mubr.bf16.mxu0 0
    %1926 = vmatmul.mubr.bf16.gmra.mrb[0].mxu0 %v177
    %v1927 = vpop.f32.mrb[0].mxu0
    %v1928 = vadd.f32 0.0, %v1927
    %v1929 = vpop.f32.mrb[0].mxu0
    %v1930 = vpop.f32.mrb[0].mxu0
    %v1931 = vadd.f32 0.0, %v1930
    %v1932 = vpop.f32.mrb[0].mxu0
    %1933 = vmatprep.mubr.bf16.mxu0 0
    %1934 = vmatmul.mubr.bf16.gmra.mrb[0].mxu0 %v180
    %v1935 = vpop.f32.mrb[0].mxu0
    %v1936 = vadd.f32 0.0, %v1935
    %v1937 = vpop.f32.mrb[0].mxu0
    %v1938 = vpop.f32.mrb[0].mxu0
    %v1939 = vadd.f32 0.0, %v1938
    %v1940 = vpop.f32.mrb[0].mxu0
    %1941 = vmatprep.mubr.bf16.mxu0 0
    %1942 = vmatmul.mubr.bf16.gmra.mrb[0].mxu0 %v183
    %v1943 = vpop.f32.mrb[0].mxu0
    %v1944 = vadd.f32 0.0, %v1943
    %v1945 = vpop.f32.mrb[0].mxu0
    %v1946 = vpop.f32.mrb[0].mxu0
    %v1947 = vadd.f32 0.0, %v1946
    %v1948 = vpop.f32.mrb[0].mxu0
    %1949 = vmatprep.mubr.bf16.mxu0 0
    %1950 = vmatmul.mubr.bf16.gmra.mrb[0].mxu0 %v186
    %v1951 = vpop.f32.mrb[0].mxu0
    %v1952 = vadd.f32 0.0, %v1951
    %v1953 = vpop.f32.mrb[0].mxu0
    %v1954 = vpop.f32.mrb[0].mxu0
    %v1955 = vadd.f32 0.0, %v1954
    %v1956 = vpop.f32.mrb[0].mxu0
    %1957 = vmatprep.mubr.bf16.mxu0 0
    %1958 = vmatmul.mubr.bf16.gmra.mrb[0].mxu0 %v189
    %v1959 = vpop.f32.mrb[0].mxu0
    %v1960 = vadd.f32 0.0, %v1959
    %v1961 = vpop.f32.mrb[0].mxu0
    %v1962 = vpop.f32.mrb[0].mxu0
    %v1963 = vadd.f32 0.0, %v1962
    %v1964 = vpop.f32.mrb[0].mxu0
    %1965 = vdwg.mxu0
    %v1967 = vsel %vm148, %v1856, 0
    %v1970 = vsel %vm148, %v1859, 0
    %v1973 = vsel %vm148, %v1864, 0
    %v1976 = vsel %vm148, %v1867, 0
    %v1979 = vsel %vm148, %v1872, 0
    %v1982 = vsel %vm148, %v1875, 0
    %v1985 = vsel %vm148, %v1880, 0
    %v1988 = vsel %vm148, %v1883, 0
    %v1991 = vsel %vm148, %v1888, 0
    %v1994 = vsel %vm148, %v1891, 0
    %v1997 = vsel %vm148, %v1896, 0
    %v2000 = vsel %vm148, %v1899, 0
    %v2003 = vsel %vm148, %v1904, 0
    %v2006 = vsel %vm148, %v1907, 0
    %v2009 = vsel %vm148, %v1912, 0
    %v2012 = vsel %vm148, %v1915, 0
    %v2015 = vsel %vm148, %v1920, 0
    %v2018 = vsel %vm148, %v1923, 0
    %v2021 = vsel %vm148, %v1928, 0
    %v2024 = vsel %vm148, %v1931, 0
    %v2027 = vsel %vm148, %v1936, 0
    %v2030 = vsel %vm148, %v1939, 0
    %v2033 = vsel %vm148, %v1944, 0
    %v2036 = vsel %vm148, %v1947, 0
    %v2039 = vsel %vm148, %v1952, 0
    %v2042 = vsel %vm148, %v1955, 0
    %v2045 = vsel %vm148, %v1960, 0
    %v2048 = vsel %vm148, %v1963, 0
    %2050 = vmatprep.subr.mxu0 %v60
    %2051 = vmatpush1.msra.mxu0 %v59
    %2052 = vmatprep.subr.mxu0 %v62
    %2053 = vmatpush1.msra.mxu0 %v61
    %2054 = vmatprep.subr.mxu0 0.0
    %2055 = vmatpush1.msra.mxu0 0.0
    %2056 = vmatprep.subr.mxu0 0.0
    %2057 = vmatpush1.msra.mxu0 0.0
    %2058 = vmatprep.subr.mxu0 0.0
    %2059 = vmatpush1.msra.mxu0 0.0
    %2060 = vmatprep.subr.mxu0 0.0
    %2061 = vmatpush1.msra.mxu0 0.0
    %2062 = vmatprep.subr.mxu0 0.0
    %2063 = vmatpush1.msra.mxu0 0.0
    %2064 = vmatprep.subr.mxu0 0.0
    %2065 = vmatpush1.msra.mxu0 0.0
    %2066 = vmatprep.subr.mxu0 0.0
    %2067 = vmatpush1.msra.mxu0 0.0
    %2068 = vmatprep.subr.mxu0 0.0
    %2069 = vmatpush1.msra.mxu0 0.0
    %2070 = vmatprep.subr.mxu0 0.0
    %2071 = vmatpush1.msra.mxu0 0.0
    %2072 = vmatprep.subr.mxu0 0.0
    %2073 = vmatpush1.msra.mxu0 0.0
    %2074 = vmatprep.subr.mxu0 0.0
    %2075 = vmatpush1.msra.mxu0 0.0
    %2076 = vmatprep.subr.mxu0 0.0
    %2077 = vmatpush1.msra.mxu0 0.0
    %2078 = vmatprep.subr.mxu0 0.0
    %2079 = vmatpush1.msra.mxu0 0.0
    %2080 = vmatprep.subr.mxu0 0.0
    %2081 = vmatpush1.msra.mxu0 0.0
    %2082 = vmatprep.subr.mxu0 0.0
    %2083 = vmatpush1.msra.mxu0 0.0
    %2084 = vmatprep.subr.mxu0 0.0
    %2085 = vmatpush1.msra.mxu0 0.0
    %2086 = vmatprep.subr.mxu0 0.0
    %2087 = vmatpush1.msra.mxu0 0.0
    %2088 = vmatprep.subr.mxu0 0.0
    %2089 = vmatpush1.msra.mxu0 0.0
    %2090 = vmatprep.subr.mxu0 0.0
    %2091 = vmatpush1.msra.mxu0 0.0
    %2092 = vmatprep.subr.mxu0 0.0
    %2093 = vmatpush1.msra.mxu0 0.0
    %2094 = vmatprep.subr.mxu0 0.0
    %2095 = vmatpush1.msra.mxu0 0.0
    %2096 = vmatprep.subr.mxu0 0.0
    %2097 = vmatpush1.msra.mxu0 0.0
    %2098 = vmatprep.subr.mxu0 0.0
    %2099 = vmatpush1.msra.mxu0 0.0
    %2100 = vmatprep.subr.mxu0 0.0
    %2101 = vmatpush1.msra.mxu0 0.0
    %2102 = vmatprep.subr.mxu0 0.0
    %2103 = vmatpush1.msra.mxu0 0.0
    %2104 = vmatprep.subr.mxu0 0.0
    %2105 = vmatpush1.msra.mxu0 0.0
    %2106 = vmatprep.subr.mxu0 0.0
    %2107 = vmatpush1.msra.mxu0 0.0
    %2108 = vmatprep.subr.mxu0 0.0
    %2109 = vmatpush1.msra.mxu0 0.0
    %2110 = vmatprep.subr.mxu0 0.0
    %2111 = vmatpush1.msra.mxu0 0.0
    %2112 = vmatprep.subr.mxu0 0.0
    %2113 = vmatpush1.msra.mxu0 0.0
    %2114 = vmatprep.mubr.f32.mxu0 0.0
    %2115 = vmatmul.mubr.f32.gmra.mrb[0].mxu0 %v1967
    %v2116 = vpop.f32.mrb[0].mxu0
    %v2117 = vadd.f32 0.5, %v2116
    %v2118 = vpop.f32.mrb[0].mxu0
    %v2119 = vadd.f32 0.5, %v2118
    %2120 = vmatprep.mubr.f32.mxu0 0.0
    %2121 = vmatmul.mubr.f32.gmra.mrb[0].mxu0 %v1970
    %v2122 = vpop.f32.mrb[0].mxu0
    %v2123 = vadd.f32 0.5, %v2122
    %v2124 = vpop.f32.mrb[0].mxu0
    %v2125 = vadd.f32 0.5, %v2124
    %2126 = vmatprep.mubr.f32.mxu0 0.0
    %2127 = vmatmul.mubr.f32.gmra.mrb[0].mxu0 %v1973
    %v2128 = vpop.f32.mrb[0].mxu0
    %v2129 = vadd.f32 0.5, %v2128
    %v2130 = vpop.f32.mrb[0].mxu0
    %v2131 = vadd.f32 0.5, %v2130
    %2132 = vmatprep.mubr.f32.mxu0 0.0
    %2133 = vmatmul.mubr.f32.gmra.mrb[0].mxu0 %v1976
    %v2134 = vpop.f32.mrb[0].mxu0
    %v2135 = vadd.f32 0.5, %v2134
    %v2136 = vpop.f32.mrb[0].mxu0
    %v2137 = vadd.f32 0.5, %v2136
    %2138 = vmatprep.mubr.f32.mxu0 0.0
    %2139 = vmatmul.mubr.f32.gmra.mrb[0].mxu0 %v1979
    %v2140 = vpop.f32.mrb[0].mxu0
    %v2141 = vadd.f32 0.5, %v2140
    %v2142 = vpop.f32.mrb[0].mxu0
    %v2143 = vadd.f32 0.5, %v2142
    %2144 = vmatprep.mubr.f32.mxu0 0.0
    %2145 = vmatmul.mubr.f32.gmra.mrb[0].mxu0 %v1982
    %v2146 = vpop.f32.mrb[0].mxu0
    %v2147 = vadd.f32 0.5, %v2146
    %v2148 = vpop.f32.mrb[0].mxu0
    %v2149 = vadd.f32 0.5, %v2148
    %2150 = vmatprep.mubr.f32.mxu0 0.0
    %2151 = vmatmul.mubr.f32.gmra.mrb[0].mxu0 %v1985
    %v2152 = vpop.f32.mrb[0].mxu0
    %v2153 = vadd.f32 0.5, %v2152
    %v2154 = vpop.f32.mrb[0].mxu0
    %v2155 = vadd.f32 0.5, %v2154
    %2156 = vmatprep.mubr.f32.mxu0 0.0
    %2157 = vmatmul.mubr.f32.gmra.mrb[0].mxu0 %v1988
    %v2158 = vpop.f32.mrb[0].mxu0
    %v2159 = vadd.f32 0.5, %v2158
    %v2160 = vpop.f32.mrb[0].mxu0
    %v2161 = vadd.f32 0.5, %v2160
    %2162 = vmatprep.mubr.f32.mxu0 0.0
    %2163 = vmatmul.mubr.f32.gmra.mrb[0].mxu0 %v1991
    %v2164 = vpop.f32.mrb[0].mxu0
    %v2165 = vadd.f32 0.5, %v2164
    %v2166 = vpop.f32.mrb[0].mxu0
    %v2167 = vadd.f32 0.5, %v2166
    %2168 = vmatprep.mubr.f32.mxu0 0.0
    %2169 = vmatmul.mubr.f32.gmra.mrb[0].mxu0 %v1994
    %v2170 = vpop.f32.mrb[0].mxu0
    %v2171 = vadd.f32 0.5, %v2170
    %v2172 = vpop.f32.mrb[0].mxu0
    %v2173 = vadd.f32 0.5, %v2172
    %2174 = vmatprep.mubr.f32.mxu0 0.0
    %2175 = vmatmul.mubr.f32.gmra.mrb[0].mxu0 %v1997
    %v2176 = vpop.f32.mrb[0].mxu0
    %v2177 = vadd.f32 0.5, %v2176
    %v2178 = vpop.f32.mrb[0].mxu0
    %v2179 = vadd.f32 0.5, %v2178
    %2180 = vmatprep.mubr.f32.mxu0 0.0
    %2181 = vmatmul.mubr.f32.gmra.mrb[0].mxu0 %v2000
    %v2182 = vpop.f32.mrb[0].mxu0
    %v2183 = vadd.f32 0.5, %v2182
    %v2184 = vpop.f32.mrb[0].mxu0
    %v2185 = vadd.f32 0.5, %v2184
    %2186 = vmatprep.mubr.f32.mxu0 0.0
    %2187 = vmatmul.mubr.f32.gmra.mrb[0].mxu0 %v2003
    %v2188 = vpop.f32.mrb[0].mxu0
    %v2189 = vadd.f32 0.5, %v2188
    %v2190 = vpop.f32.mrb[0].mxu0
    %v2191 = vadd.f32 0.5, %v2190
    %2192 = vmatprep.mubr.f32.mxu0 0.0
    %2193 = vmatmul.mubr.f32.gmra.mrb[0].mxu0 %v2006
    %v2194 = vpop.f32.mrb[0].mxu0
    %v2195 = vadd.f32 0.5, %v2194
    %v2196 = vpop.f32.mrb[0].mxu0
    %v2197 = vadd.f32 0.5, %v2196
    %2198 = vmatprep.mubr.f32.mxu0 0.0
    %2199 = vmatmul.mubr.f32.gmra.mrb[0].mxu0 %v2009
    %v2200 = vpop.f32.mrb[0].mxu0
    %v2201 = vadd.f32 0.5, %v2200
    %v2202 = vpop.f32.mrb[0].mxu0
    %v2203 = vadd.f32 0.5, %v2202
    %2204 = vmatprep.mubr.f32.mxu0 0.0
    %2205 = vmatmul.mubr.f32.gmra.mrb[0].mxu0 %v2012
    %v2206 = vpop.f32.mrb[0].mxu0
    %v2207 = vadd.f32 0.5, %v2206
    %v2208 = vpop.f32.mrb[0].mxu0
    %v2209 = vadd.f32 0.5, %v2208
    %2210 = vmatprep.mubr.f32.mxu0 0.0
    %2211 = vmatmul.mubr.f32.gmra.mrb[0].mxu0 %v2015
    %v2212 = vpop.f32.mrb[0].mxu0
    %v2213 = vadd.f32 0.5, %v2212
    %v2214 = vpop.f32.mrb[0].mxu0
    %v2215 = vadd.f32 0.5, %v2214
    %2216 = vmatprep.mubr.f32.mxu0 0.0
    %2217 = vmatmul.mubr.f32.gmra.mrb[0].mxu0 %v2018
    %v2218 = vpop.f32.mrb[0].mxu0
    %v2219 = vadd.f32 0.5, %v2218
    %v2220 = vpop.f32.mrb[0].mxu0
    %v2221 = vadd.f32 0.5, %v2220
    %2222 = vmatprep.mubr.f32.mxu0 0.0
    %2223 = vmatmul.mubr.f32.gmra.mrb[0].mxu0 %v2021
    %v2224 = vpop.f32.mrb[0].mxu0
    %v2225 = vadd.f32 0.5, %v2224
    %v2226 = vpop.f32.mrb[0].mxu0
    %v2227 = vadd.f32 0.5, %v2226
    %2228 = vmatprep.mubr.f32.mxu0 0.0
    %2229 = vmatmul.mubr.f32.gmra.mrb[0].mxu0 %v2024
    %v2230 = vpop.f32.mrb[0].mxu0
    %v2231 = vadd.f32 0.5, %v2230
    %v2232 = vpop.f32.mrb[0].mxu0
    %v2233 = vadd.f32 0.5, %v2232
    %2234 = vmatprep.mubr.f32.mxu0 0.0
    %2235 = vmatmul.mubr.f32.gmra.mrb[0].mxu0 %v2027
    %v2236 = vpop.f32.mrb[0].mxu0
    %v2237 = vadd.f32 0.5, %v2236
    %v2238 = vpop.f32.mrb[0].mxu0
    %v2239 = vadd.f32 0.5, %v2238
    %2240 = vmatprep.mubr.f32.mxu0 0.0
    %2241 = vmatmul.mubr.f32.gmra.mrb[0].mxu0 %v2030
    %v2242 = vpop.f32.mrb[0].mxu0
    %v2243 = vadd.f32 0.5, %v2242
    %v2244 = vpop.f32.mrb[0].mxu0
    %v2245 = vadd.f32 0.5, %v2244
    %2246 = vmatprep.mubr.f32.mxu0 0.0
    %2247 = vmatmul.mubr.f32.gmra.mrb[0].mxu0 %v2033
    %v2248 = vpop.f32.mrb[0].mxu0
    %v2249 = vadd.f32 0.5, %v2248
    %v2250 = vpop.f32.mrb[0].mxu0
    %v2251 = vadd.f32 0.5, %v2250
    %2252 = vmatprep.mubr.f32.mxu0 0.0
    %2253 = vmatmul.mubr.f32.gmra.mrb[0].mxu0 %v2036
    %v2254 = vpop.f32.mrb[0].mxu0
    %v2255 = vadd.f32 0.5, %v2254
    %v2256 = vpop.f32.mrb[0].mxu0
    %v2257 = vadd.f32 0.5, %v2256
    %2258 = vmatprep.mubr.f32.mxu0 0.0
    %2259 = vmatmul.mubr.f32.gmra.mrb[0].mxu0 %v2039
    %v2260 = vpop.f32.mrb[0].mxu0
    %v2261 = vadd.f32 0.5, %v2260
    %v2262 = vpop.f32.mrb[0].mxu0
    %v2263 = vadd.f32 0.5, %v2262
    %2264 = vmatprep.mubr.f32.mxu0 0.0
    %2265 = vmatmul.mubr.f32.gmra.mrb[0].mxu0 %v2042
    %v2266 = vpop.f32.mrb[0].mxu0
    %v2267 = vadd.f32 0.5, %v2266
    %v2268 = vpop.f32.mrb[0].mxu0
    %v2269 = vadd.f32 0.5, %v2268
    %2270 = vmatprep.mubr.f32.mxu0 0.0
    %2271 = vmatmul.mubr.f32.gmra.mrb[0].mxu0 %v2045
    %v2272 = vpop.f32.mrb[0].mxu0
    %v2273 = vadd.f32 0.5, %v2272
    %v2274 = vpop.f32.mrb[0].mxu0
    %v2275 = vadd.f32 0.5, %v2274
    %2276 = vmatprep.mubr.f32.mxu0 0.0
    %2277 = vmatmul.mubr.f32.gmra.mrb[0].mxu0 %v2048
    %v2278 = vpop.f32.mrb[0].mxu0
    %v2279 = vadd.f32 0.5, %v2278
    %v2280 = vpop.f32.mrb[0].mxu0
    %v2281 = vadd.f32 0.5, %v2280
    %2282 = vdwg.mxu0
    %v2283 = vfloor.f32 %v2117
    %v2284 = vfloor.f32 %v2119
    %v2285 = vfloor.f32 %v2123
    %v2286 = vfloor.f32 %v2125
    %v2287 = vfloor.f32 %v2129
    %v2288 = vfloor.f32 %v2131
    %v2289 = vfloor.f32 %v2135
    %v2290 = vfloor.f32 %v2137
    %v2291 = vfloor.f32 %v2141
    %v2292 = vfloor.f32 %v2143
    %v2293 = vfloor.f32 %v2147
    %v2294 = vfloor.f32 %v2149
    %v2295 = vfloor.f32 %v2153
    %v2296 = vfloor.f32 %v2155
    %v2297 = vfloor.f32 %v2159
    %v2298 = vfloor.f32 %v2161
    %v2299 = vfloor.f32 %v2165
    %v2300 = vfloor.f32 %v2167
    %v2301 = vfloor.f32 %v2171
    %v2302 = vfloor.f32 %v2173
    %v2303 = vfloor.f32 %v2177
    %v2304 = vfloor.f32 %v2179
    %v2305 = vfloor.f32 %v2183
    %v2306 = vfloor.f32 %v2185
    %v2307 = vfloor.f32 %v2189
    %v2308 = vfloor.f32 %v2191
    %v2309 = vfloor.f32 %v2195
    %v2310 = vfloor.f32 %v2197
    %v2311 = vfloor.f32 %v2201
    %v2312 = vfloor.f32 %v2203
    %v2313 = vfloor.f32 %v2207
    %v2314 = vfloor.f32 %v2209
    %v2315 = vfloor.f32 %v2213
    %v2316 = vfloor.f32 %v2215
    %v2317 = vfloor.f32 %v2219
    %v2318 = vfloor.f32 %v2221
    %v2319 = vfloor.f32 %v2225
    %v2320 = vfloor.f32 %v2227
    %v2321 = vfloor.f32 %v2231
    %v2322 = vfloor.f32 %v2233
    %v2323 = vfloor.f32 %v2237
    %v2324 = vfloor.f32 %v2239
    %v2325 = vfloor.f32 %v2243
    %v2326 = vfloor.f32 %v2245
    %v2327 = vfloor.f32 %v2249
    %v2328 = vfloor.f32 %v2251
    %v2329 = vfloor.f32 %v2255
    %v2330 = vfloor.f32 %v2257
    %v2331 = vfloor.f32 %v2261
    %v2332 = vfloor.f32 %v2263
    %v2333 = vfloor.f32 %v2267
    %v2334 = vfloor.f32 %v2269
    %v2335 = vfloor.f32 %v2273
    %v2336 = vfloor.f32 %v2275
    %v2337 = vfloor.f32 %v2279
    %v2338 = vfloor.f32 %v2281
    %v2339 = vmax.f32 %v2283, 0.0
    %v2340 = vmax.f32 %v2284, 0.0
    %v2341 = vmax.f32 %v2285, 0.0
    %v2342 = vmax.f32 %v2286, 0.0
    %v2343 = vmax.f32 %v2287, 0.0
    %v2344 = vmax.f32 %v2288, 0.0
    %v2345 = vmax.f32 %v2289, 0.0
    %v2346 = vmax.f32 %v2290, 0.0
    %v2347 = vmax.f32 %v2291, 0.0
    %v2348 = vmax.f32 %v2292, 0.0
    %v2349 = vmax.f32 %v2293, 0.0
    %v2350 = vmax.f32 %v2294, 0.0
    %v2351 = vmax.f32 %v2295, 0.0
    %v2352 = vmax.f32 %v2296, 0.0
    %v2353 = vmax.f32 %v2297, 0.0
    %v2354 = vmax.f32 %v2298, 0.0
    %v2355 = vmax.f32 %v2299, 0.0
    %v2356 = vmax.f32 %v2300, 0.0
    %v2357 = vmax.f32 %v2301, 0.0
    %v2358 = vmax.f32 %v2302, 0.0
    %v2359 = vmax.f32 %v2303, 0.0
    %v2360 = vmax.f32 %v2304, 0.0
    %v2361 = vmax.f32 %v2305, 0.0
    %v2362 = vmax.f32 %v2306, 0.0
    %v2363 = vmax.f32 %v2307, 0.0
    %v2364 = vmax.f32 %v2308, 0.0
    %v2365 = vmax.f32 %v2309, 0.0
    %v2366 = vmax.f32 %v2310, 0.0
    %v2367 = vmax.f32 %v2311, 0.0
    %v2368 = vmax.f32 %v2312, 0.0
    %v2369 = vmax.f32 %v2313, 0.0
    %v2370 = vmax.f32 %v2314, 0.0
    %v2371 = vmax.f32 %v2315, 0.0
    %v2372 = vmax.f32 %v2316, 0.0
    %v2373 = vmax.f32 %v2317, 0.0
    %v2374 = vmax.f32 %v2318, 0.0
    %v2375 = vmax.f32 %v2319, 0.0
    %v2376 = vmax.f32 %v2320, 0.0
    %v2377 = vmax.f32 %v2321, 0.0
    %v2378 = vmax.f32 %v2322, 0.0
    %v2379 = vmax.f32 %v2323, 0.0
    %v2380 = vmax.f32 %v2324, 0.0
    %v2381 = vmax.f32 %v2325, 0.0
    %v2382 = vmax.f32 %v2326, 0.0
    %v2383 = vmax.f32 %v2327, 0.0
    %v2384 = vmax.f32 %v2328, 0.0
    %v2385 = vmax.f32 %v2329, 0.0
    %v2386 = vmax.f32 %v2330, 0.0
    %v2387 = vmax.f32 %v2331, 0.0
    %v2388 = vmax.f32 %v2332, 0.0
    %v2389 = vmax.f32 %v2333, 0.0
    %v2390 = vmax.f32 %v2334, 0.0
    %v2391 = vmax.f32 %v2335, 0.0
    %v2392 = vmax.f32 %v2336, 0.0
    %v2393 = vmax.f32 %v2337, 0.0
    %v2394 = vmax.f32 %v2338, 0.0
    %v2395 = vmin.f32 %v2339, 255.0
    %v2396 = vmin.f32 %v2340, 255.0
    %v2397 = vmin.f32 %v2341, 255.0
    %v2398 = vmin.f32 %v2342, 255.0
    %v2399 = vmin.f32 %v2343, 255.0
    %v2400 = vmin.f32 %v2344, 255.0
    %v2401 = vmin.f32 %v2345, 255.0
    %v2402 = vmin.f32 %v2346, 255.0
    %v2403 = vmin.f32 %v2347, 255.0
    %v2404 = vmin.f32 %v2348, 255.0
    %v2405 = vmin.f32 %v2349, 255.0
    %v2406 = vmin.f32 %v2350, 255.0
    %v2407 = vmin.f32 %v2351, 255.0
    %v2408 = vmin.f32 %v2352, 255.0
    %v2409 = vmin.f32 %v2353, 255.0
    %v2410 = vmin.f32 %v2354, 255.0
    %v2411 = vmin.f32 %v2355, 255.0
    %v2412 = vmin.f32 %v2356, 255.0
    %v2413 = vmin.f32 %v2357, 255.0
    %v2414 = vmin.f32 %v2358, 255.0
    %v2415 = vmin.f32 %v2359, 255.0
    %v2416 = vmin.f32 %v2360, 255.0
    %v2417 = vmin.f32 %v2361, 255.0
    %v2418 = vmin.f32 %v2362, 255.0
    %v2419 = vmin.f32 %v2363, 255.0
    %v2420 = vmin.f32 %v2364, 255.0
    %v2421 = vmin.f32 %v2365, 255.0
    %v2422 = vmin.f32 %v2366, 255.0
    %v2423 = vmin.f32 %v2367, 255.0
    %v2424 = vmin.f32 %v2368, 255.0
    %v2425 = vmin.f32 %v2369, 255.0
    %v2426 = vmin.f32 %v2370, 255.0
    %v2427 = vmin.f32 %v2371, 255.0
    %v2428 = vmin.f32 %v2372, 255.0
    %v2429 = vmin.f32 %v2373, 255.0
    %v2430 = vmin.f32 %v2374, 255.0
    %v2431 = vmin.f32 %v2375, 255.0
    %v2432 = vmin.f32 %v2376, 255.0
    %v2433 = vmin.f32 %v2377, 255.0
    %v2434 = vmin.f32 %v2378, 255.0
    %v2435 = vmin.f32 %v2379, 255.0
    %v2436 = vmin.f32 %v2380, 255.0
    %v2437 = vmin.f32 %v2381, 255.0
    %v2438 = vmin.f32 %v2382, 255.0
    %v2439 = vmin.f32 %v2383, 255.0
    %v2440 = vmin.f32 %v2384, 255.0
    %v2441 = vmin.f32 %v2385, 255.0
    %v2442 = vmin.f32 %v2386, 255.0
    %v2443 = vmin.f32 %v2387, 255.0
    %v2444 = vmin.f32 %v2388, 255.0
    %v2445 = vmin.f32 %v2389, 255.0
    %v2446 = vmin.f32 %v2390, 255.0
    %v2447 = vmin.f32 %v2391, 255.0
    %v2448 = vmin.f32 %v2392, 255.0
    %v2449 = vmin.f32 %v2393, 255.0
    %v2450 = vmin.f32 %v2394, 255.0
    %v2451 = vmul.f32 %v2395, 0.007843138
    %v2452 = vmul.f32 %v2396, 0.007843138
    %v2453 = vmul.f32 %v2397, 0.007843138
    %v2454 = vmul.f32 %v2398, 0.007843138
    %v2455 = vmul.f32 %v2399, 0.007843138
    %v2456 = vmul.f32 %v2400, 0.007843138
    %v2457 = vmul.f32 %v2401, 0.007843138
    %v2458 = vmul.f32 %v2402, 0.007843138
    %v2459 = vmul.f32 %v2403, 0.007843138
    %v2460 = vmul.f32 %v2404, 0.007843138
    %v2461 = vmul.f32 %v2405, 0.007843138
    %v2462 = vmul.f32 %v2406, 0.007843138
    %v2463 = vmul.f32 %v2407, 0.007843138
    %v2464 = vmul.f32 %v2408, 0.007843138
    %v2465 = vmul.f32 %v2409, 0.007843138
    %v2466 = vmul.f32 %v2410, 0.007843138
    %v2467 = vmul.f32 %v2411, 0.007843138
    %v2468 = vmul.f32 %v2412, 0.007843138
    %v2469 = vmul.f32 %v2413, 0.007843138
    %v2470 = vmul.f32 %v2414, 0.007843138
    %v2471 = vmul.f32 %v2415, 0.007843138
    %v2472 = vmul.f32 %v2416, 0.007843138
    %v2473 = vmul.f32 %v2417, 0.007843138
    %v2474 = vmul.f32 %v2418, 0.007843138
    %v2475 = vmul.f32 %v2419, 0.007843138
    %v2476 = vmul.f32 %v2420, 0.007843138
    %v2477 = vmul.f32 %v2421, 0.007843138
    %v2478 = vmul.f32 %v2422, 0.007843138
    %v2479 = vmul.f32 %v2423, 0.007843138
    %v2480 = vmul.f32 %v2424, 0.007843138
    %v2481 = vmul.f32 %v2425, 0.007843138
    %v2482 = vmul.f32 %v2426, 0.007843138
    %v2483 = vmul.f32 %v2427, 0.007843138
    %v2484 = vmul.f32 %v2428, 0.007843138
    %v2485 = vmul.f32 %v2429, 0.007843138
    %v2486 = vmul.f32 %v2430, 0.007843138
    %v2487 = vmul.f32 %v2431, 0.007843138
    %v2488 = vmul.f32 %v2432, 0.007843138
    %v2489 = vmul.f32 %v2433, 0.007843138
    %v2490 = vmul.f32 %v2434, 0.007843138
    %v2491 = vmul.f32 %v2435, 0.007843138
    %v2492 = vmul.f32 %v2436, 0.007843138
    %v2493 = vmul.f32 %v2437, 0.007843138
    %v2494 = vmul.f32 %v2438, 0.007843138
    %v2495 = vmul.f32 %v2439, 0.007843138
    %v2496 = vmul.f32 %v2440, 0.007843138
    %v2497 = vmul.f32 %v2441, 0.007843138
    %v2498 = vmul.f32 %v2442, 0.007843138
    %v2499 = vmul.f32 %v2443, 0.007843138
    %v2500 = vmul.f32 %v2444, 0.007843138
    %v2501 = vmul.f32 %v2445, 0.007843138
    %v2502 = vmul.f32 %v2446, 0.007843138
    %v2503 = vmul.f32 %v2447, 0.007843138
    %v2504 = vmul.f32 %v2448, 0.007843138
    %v2505 = vmul.f32 %v2449, 0.007843138
    %v2506 = vmul.f32 %v2450, 0.007843138
    %v2507 = vsub.f32 %v2451, 1.0
    %v2508 = vsub.f32 %v2452, 1.0
    %v2509 = vsub.f32 %v2453, 1.0
    %v2510 = vsub.f32 %v2454, 1.0
    %v2511 = vsub.f32 %v2455, 1.0
    %v2512 = vsub.f32 %v2456, 1.0
    %v2513 = vsub.f32 %v2457, 1.0
    %v2514 = vsub.f32 %v2458, 1.0
    %v2515 = vsub.f32 %v2459, 1.0
    %v2516 = vsub.f32 %v2460, 1.0
    %v2517 = vsub.f32 %v2461, 1.0
    %v2518 = vsub.f32 %v2462, 1.0
    %v2519 = vsub.f32 %v2463, 1.0
    %v2520 = vsub.f32 %v2464, 1.0
    %v2521 = vsub.f32 %v2465, 1.0
    %v2522 = vsub.f32 %v2466, 1.0
    %v2523 = vsub.f32 %v2467, 1.0
    %v2524 = vsub.f32 %v2468, 1.0
    %v2525 = vsub.f32 %v2469, 1.0
    %v2526 = vsub.f32 %v2470, 1.0
    %v2527 = vsub.f32 %v2471, 1.0
    %v2528 = vsub.f32 %v2472, 1.0
    %v2529 = vsub.f32 %v2473, 1.0
    %v2530 = vsub.f32 %v2474, 1.0
    %v2531 = vsub.f32 %v2475, 1.0
    %v2532 = vsub.f32 %v2476, 1.0
    %v2533 = vsub.f32 %v2477, 1.0
    %v2534 = vsub.f32 %v2478, 1.0
    %v2535 = vsub.f32 %v2479, 1.0
    %v2536 = vsub.f32 %v2480, 1.0
    %v2537 = vsub.f32 %v2481, 1.0
    %v2538 = vsub.f32 %v2482, 1.0
    %v2539 = vsub.f32 %v2483, 1.0
    %v2540 = vsub.f32 %v2484, 1.0
    %v2541 = vsub.f32 %v2485, 1.0
    %v2542 = vsub.f32 %v2486, 1.0
    %v2543 = vsub.f32 %v2487, 1.0
    %v2544 = vsub.f32 %v2488, 1.0
    %v2545 = vsub.f32 %v2489, 1.0
    %v2546 = vsub.f32 %v2490, 1.0
    %v2547 = vsub.f32 %v2491, 1.0
    %v2548 = vsub.f32 %v2492, 1.0
    %v2549 = vsub.f32 %v2493, 1.0
    %v2550 = vsub.f32 %v2494, 1.0
    %v2551 = vsub.f32 %v2495, 1.0
    %v2552 = vsub.f32 %v2496, 1.0
    %v2553 = vsub.f32 %v2497, 1.0
    %v2554 = vsub.f32 %v2498, 1.0
    %v2555 = vsub.f32 %v2499, 1.0
    %v2556 = vsub.f32 %v2500, 1.0
    %v2557 = vsub.f32 %v2501, 1.0
    %v2558 = vsub.f32 %v2502, 1.0
    %v2559 = vsub.f32 %v2503, 1.0
    %v2560 = vsub.f32 %v2504, 1.0
    %v2561 = vsub.f32 %v2505, 1.0
    %v2562 = vsub.f32 %v2506, 1.0
    %s2563 = scalar_lea.vmem [#allocation2], 896
    %2564 = vst [vmem:[%s2563] sm:$0xff] %v2507
    %2565 = vst.msk [vmem:[%s2563 + $0x8] sm:$0xff] %vm934, %v2508
    %2566 = vst [vmem:[%s2563 + $0x10] sm:$0xff] %v2509
    %2567 = vst.msk [vmem:[%s2563 + $0x18] sm:$0xff] %vm934, %v2510
    %2568 = vst [vmem:[%s2563 + $0x20] sm:$0xff] %v2511
    %2569 = vst.msk [vmem:[%s2563 + $0x28] sm:$0xff] %vm934, %v2512
    %2570 = vst [vmem:[%s2563 + $0x30] sm:$0xff] %v2513
    %2571 = vst.msk [vmem:[%s2563 + $0x38] sm:$0xff] %vm934, %v2514
    %2572 = vst [vmem:[%s2563 + $0x40] sm:$0xff] %v2515
    %2573 = vst.msk [vmem:[%s2563 + $0x48] sm:$0xff] %vm934, %v2516
    %2574 = vst [vmem:[%s2563 + $0x50] sm:$0xff] %v2517
    %2575 = vst.msk [vmem:[%s2563 + $0x58] sm:$0xff] %vm934, %v2518
    %2576 = vst [vmem:[%s2563 + $0x60] sm:$0xff] %v2519
    %2577 = vst.msk [vmem:[%s2563 + $0x68] sm:$0xff] %vm934, %v2520
    %2578 = vst [vmem:[%s2563 + $0x70] sm:$0xff] %v2521
    %2579 = vst.msk [vmem:[%s2563 + $0x78] sm:$0xff] %vm934, %v2522
    %2580 = vst [vmem:[%s2563 + $0x80] sm:$0xff] %v2523
    %2581 = vst.msk [vmem:[%s2563 + $0x88] sm:$0xff] %vm934, %v2524
    %2582 = vst [vmem:[%s2563 + $0x90] sm:$0xff] %v2525
    %2583 = vst.msk [vmem:[%s2563 + $0x98] sm:$0xff] %vm934, %v2526
    %2584 = vst [vmem:[%s2563 + $0xa0] sm:$0xff] %v2527
    %2585 = vst.msk [vmem:[%s2563 + $0xa8] sm:$0xff] %vm934, %v2528
    %2586 = vst [vmem:[%s2563 + $0xb0] sm:$0xff] %v2529
    %2587 = vst.msk [vmem:[%s2563 + $0xb8] sm:$0xff] %vm934, %v2530
    %2588 = vst [vmem:[%s2563 + $0xc0] sm:$0xff] %v2531
    %2589 = vst.msk [vmem:[%s2563 + $0xc8] sm:$0xff] %vm934, %v2532
    %2590 = vst [vmem:[%s2563 + $0xd0] sm:$0xff] %v2533
    %2591 = vst.msk [vmem:[%s2563 + $0xd8] sm:$0xff] %vm934, %v2534
    %2592 = vst [vmem:[%s2563 + $0xe0] sm:$0xff] %v2535
    %2593 = vst.msk [vmem:[%s2563 + $0xe8] sm:$0xff] %vm934, %v2536
    %2594 = vst [vmem:[%s2563 + $0xf0] sm:$0xff] %v2537
    %2595 = vst.msk [vmem:[%s2563 + $0xf8] sm:$0xff] %vm934, %v2538
    %2596 = vst [vmem:[%s2563 + $0x100] sm:$0xff] %v2539
    %2597 = vst.msk [vmem:[%s2563 + $0x108] sm:$0xff] %vm934, %v2540
    %2598 = vst [vmem:[%s2563 + $0x110] sm:$0xff] %v2541
    %2599 = vst.msk [vmem:[%s2563 + $0x118] sm:$0xff] %vm934, %v2542
    %2600 = vst [vmem:[%s2563 + $0x120] sm:$0xff] %v2543
    %2601 = vst.msk [vmem:[%s2563 + $0x128] sm:$0xff] %vm934, %v2544
    %2602 = vst [vmem:[%s2563 + $0x130] sm:$0xff] %v2545
    %2603 = vst.msk [vmem:[%s2563 + $0x138] sm:$0xff] %vm934, %v2546
    %2604 = vst [vmem:[%s2563 + $0x140] sm:$0xff] %v2547
    %2605 = vst.msk [vmem:[%s2563 + $0x148] sm:$0xff] %vm934, %v2548
    %2606 = vst [vmem:[%s2563 + $0x150] sm:$0xff] %v2549
    %2607 = vst.msk [vmem:[%s2563 + $0x158] sm:$0xff] %vm934, %v2550
    %2608 = vst [vmem:[%s2563 + $0x160] sm:$0xff] %v2551
    %2609 = vst.msk [vmem:[%s2563 + $0x168] sm:$0xff] %vm934, %v2552
    %2610 = vst [vmem:[%s2563 + $0x170] sm:$0xff] %v2553
    %2611 = vst.msk [vmem:[%s2563 + $0x178] sm:$0xff] %vm934, %v2554
    %2612 = vst [vmem:[%s2563 + $0x180] sm:$0xff] %v2555
    %2613 = vst.msk [vmem:[%s2563 + $0x188] sm:$0xff] %vm934, %v2556
    %2614 = vst [vmem:[%s2563 + $0x190] sm:$0xff] %v2557
    %2615 = vst.msk [vmem:[%s2563 + $0x198] sm:$0xff] %vm934, %v2558
    %2616 = vst [vmem:[%s2563 + $0x1a0] sm:$0xff] %v2559
    %2617 = vst.msk [vmem:[%s2563 + $0x1a8] sm:$0xff] %vm934, %v2560
    %2618 = vst [vmem:[%s2563 + $0x1b0] sm:$0xff] %v2561
    %2619 = vst.msk [vmem:[%s2563 + $0x1b8] sm:$0xff] %vm934, %v2562
    // Predicated region
    $region14: #{tpu_custom_call.1} parent=1 // pred_check
      _
    $region15: #{tpu_custom_call.1} parent=1 // pred_check_branch
      %2621 = sbr.rel (0) target = $region17
    $region16: #{tpu_custom_call.1} parent=1 // pred_region
      %s2623 = ssub.s32 21504, 21504
      %2624 = vsyncadd [#allocation3], %s2623
      %s2625 = sshll.u32 [#allocation2], 4
      %s2626 = int_to_ptr.vmem [resolvable:$true] %s2625
      %2631 = dma.vmem_to_hbm [thread:$0]  %s2626, 21504, %s3, [#allocation3], 256, 256, 16
    $region17: #{tpu_custom_call.1} parent=1 // pred_fallthru
      _
    // Predicated region
    $region18: #{tpu_custom_call.1} parent=1 // pred_check
      _
    $region19: #{tpu_custom_call.1} parent=1 // pred_check_branch
      %2633 = sbr.rel (0) target = $region21
    $region20: #{tpu_custom_call.1} parent=1 // pred_region
      %2634 = dma.done [#allocation3], 21504
    $region21: #{tpu_custom_call.1} parent=1 // pred_fallthru
      _
    %2635 = vsyncpa [#allocation3], 1

</llo_original>
